<compile_context>
chip_gen: v5e
topology: v5e:2x2
jax: 0.10.0
libtpu: 0.0.40
codegen_flags: <defaults>
</compile_context>

<pallas_src>
import math

import jax
import jax.numpy as jnp
import numpy as np
from jax.experimental import pallas as pl
from jax.experimental.pallas import tpu as pltpu


def _round_up(x, m):
    return (x + m - 1) // m * m


# ------------------ phase 1: fused S-step recurrence kernel -------------------
def _recurrence_kernel(
    # scalar prefetch (SMEM)
    wi_ref,        # (S*B,) int32 token ids, step-major
    # resident inputs (constant index_map -> DMA'd once for the whole decode)
    h0_ref,        # (B, H)     f32  initial hidden (last layer)
    enc_ref,       # (B, T, H)  cdt  encoder outputs (batch-major)
    enc_flat_ref,  # (B*T, H)   cdt  pre-flattened copy (init-time projection only)
    emb_ref,       # (Vr, E)    cdt  embedding table, VMEM resident
    wh_ref,        # (H, H)     cdt  attn W (hidden half), pre-transposed
    we_ref,        # (H, H)     cdt  attn W (encoder half), pre-transposed
    attn_b_ref,    # (1, H)     f32
    attn_v_ref,    # (1, H)     f32
    w_ie_ref,      # (E, 3H)    cdt  GRU W_ih (embedding part), pre-transposed
    w_ic_ref,      # (H, 3H)    cdt  GRU W_ih (context part), pre-transposed
    w_hh_ref,      # (H, 3H)    cdt  GRU W_hh, pre-transposed
    b_rz_ref,      # (1, 2H)    f32  b_ih+b_hh folded for r,z gates
    b_in_ref,      # (1, H)     f32  b_ih of n gate
    b_hn_ref,      # (1, H)     f32  b_hh of n gate
    # outputs
    h_out_ref,     # (B, H)     f32  new hidden for this step
    # scratch
    h_scr,         # (B, H)     f32  carried hidden state
    encp_scr,      # (B, T, H)  f32  We @ enc + attn_b (step-invariant)
    emb_scr,       # (B, E)     cdt  gathered embedding rows
):
    s = pl.program_id(0)
    B, T, H = enc_ref.shape

    def mm(x, w):
        # cast LHS to the weight dtype (bf16 path) but always accumulate in f32
        return jnp.dot(x.astype(w.dtype), w, preferred_element_type=jnp.float32)

    # ---- once per decode: project encoder outputs (step-invariant) ----
    @pl.when(s == 0)
    def _init():
        h_scr[...] = h0_ref[...]
        encp = mm(enc_flat_ref[...], we_ref[...])                 # (B*T, H)
        encp_scr[...] = encp.reshape(B, T, H) + attn_b_ref[...][None, :, :]

    # ---- embedding lookup: table resident in VMEM, per-row dynamic loads ----
    for b in range(B):                                            # B is a static int
        idx = wi_ref[s * B + b]
        emb_scr[pl.ds(b, 1), :] = emb_ref[pl.ds(idx, 1), :]
    emb = emb_scr[...]                                            # (B, E)
    # TODO(synk): training-mode dropout on the embedding not implemented (eval).

    h_prev = h_scr[...]                                           # (B, H) f32

    # ---- Attn('concat'): energy = tanh(W[h; enc] + b); score = v . energy ----
    hid_part = mm(h_prev, wh_ref[...])                            # (B, H)
    energy = jnp.tanh(encp_scr[...] + hid_part[:, None, :])       # (B, T, H)
    scores = jnp.sum(energy * attn_v_ref[...][None, :, :], axis=-1)   # (B, T)
    scores = scores - jnp.max(scores, axis=-1, keepdims=True)
    ex = jnp.exp(scores)
    attn_w = ex * pl.reciprocal(jnp.sum(ex, axis=-1, keepdims=True), approx=True)

    # context = attn_weights.bmm(encoder_outputs): VPU weighted sum + XLU reduce
    ctx = jnp.sum(attn_w[:, :, None] * enc_ref[...].astype(jnp.float32), axis=1)  # (B, H)

    # ---- GRU cell (PyTorch gate order r, z, n); concat avoided via split weights ----
    gi = mm(emb, w_ie_ref[...]) + mm(ctx, w_ic_ref[...])          # (B, 3H)
    gh = mm(h_prev, w_hh_ref[...])                                # (B, 3H)
    rz = jax.nn.sigmoid(gi[:, : 2 * H] + gh[:, : 2 * H] + b_rz_ref[...])
    r = rz[:, :H]
    z = rz[:, H:]
    n = jnp.tanh(gi[:, 2 * H:] + b_in_ref[...] + r * (gh[:, 2 * H:] + b_hn_ref[...]))
    h_new = (1.0 - z) * n + z * h_prev                            # (B, H)

    h_scr[...] = h_new
    h_out_ref[...] = h_new.astype(h_out_ref.dtype)


# ------------- phase 2: output projection + log-softmax kernel ----------------
def _projection_kernel(h_ref, out_w_ref, out_b_ref, logp_ref):
    # (TILE_M, H) x (H, Vp) resident weight; exact log-softmax over the full vocab.
    logits = jnp.dot(h_ref[...].astype(out_w_ref.dtype), out_w_ref[...],
                     preferred_element_type=jnp.float32) + out_b_ref[...]
    m = jnp.max(logits, axis=-1, keepdims=True)
    lse = m + jnp.log(jnp.sum(jnp.exp(logits - m), axis=-1, keepdims=True))
    logp_ref[...] = (logits - lse).astype(logp_ref.dtype)


# ------------------------------ wrapper ----------------------------------------
def bahdanau_decoder_decode(word_inputs, last_hidden, encoder_outputs, params,
                            *, tile_m=32, compute_dtype=jnp.float32):
    """Fused S-step teacher-forced decode.

    word_inputs:      (S, B) int32
    last_hidden:      (n_layers, B, H) f32   (n_layers must be 1)
    encoder_outputs:  (T, B, H) f32
    Returns (log_probs (S, B, V), hidden_states (S, B, H)); hidden_states[s] is the GRU
    hidden after step s (the module's `hidden` for step s is hidden_states[s][None]).
    """
    S, B = word_inputs.shape
    T, _, H = encoder_outputs.shape
    V, E = params["embedding"].shape
    cdt = jnp.dtype(compute_dtype)

    # ---- pre-transpose / pre-split / fold parameters (trace-time, once) ----
    Vr = _round_up(V, 8)
    emb_t = jnp.pad(params["embedding"], ((0, Vr - V), (0, 0))).astype(cdt)     # (Vr, E)
    attn_w = params["attn_w"]                                                   # (H, 2H)
    wh_t = attn_w[:, :H].T.astype(cdt)                                          # (H, H)
    we_t = attn_w[:, H:].T.astype(cdt)                                          # (H, H)
    attn_b = params["attn_b"].reshape(1, H).astype(jnp.float32)
    attn_v = params["attn_v"].reshape(1, H).astype(jnp.float32)
    w_ih = params["w_ih"]                                                       # (3H, E+H)
    w_ie_t = w_ih[:, :E].T.astype(cdt)                                          # (E, 3H)
    w_ic_t = w_ih[:, E:].T.astype(cdt)                                          # (H, 3H)
    w_hh_t = params["w_hh"].T.astype(cdt)                                       # (H, 3H)
    b_ih = params["b_ih"].astype(jnp.float32)
    b_hh = params["b_hh"].astype(jnp.float32)
    b_rz = (b_ih[: 2 * H] + b_hh[: 2 * H]).reshape(1, 2 * H)
    b_in = b_ih[2 * H:].reshape(1, H)
    b_hn = b_hh[2 * H:].reshape(1, H)

    enc_bth = jnp.transpose(encoder_outputs, (1, 0, 2)).astype(cdt)             # (B, T, H)
    enc_flat = enc_bth.reshape(B * T, H)                                        # (B*T, H)
    h0 = last_hidden[-1].astype(jnp.float32)                                    # (B, H)
    wi_flat = word_inputs.reshape(-1).astype(jnp.int32)                         # (S*B,)

    itm = jnp.dtype(cdt).itemsize

    # ------------------------- phase 1: recurrence ----------------------------
    const2 = lambda s, wi: (0, 0)
    const3 = lambda s, wi: (0, 0, 0)
    rec_flops = int(2 * B * T * H * H
                    + S * (2 * B * H * H + 2 * B * (E + 2 * H) * 3 * H + 2 * B * T * H))
    rec_transc = int(S * (B * T * H + B * T + 3 * B * H))
    rec_bytes = int(4 * S * B + 4 * h0.size
                    + (enc_bth.size + enc_flat.size + emb_t.size
                       + wh_t.size + we_t.size + w_ie_t.size + w_ic_t.size + w_hh_t.size) * itm
                    + 4 * S * B * H)

    h_all = pl.pallas_call(
        _recurrence_kernel,
        out_shape=jax.ShapeDtypeStruct((S, B, H), jnp.float32),
        grid_spec=pltpu.PrefetchScalarGridSpec(
            num_scalar_prefetch=1,
            grid=(S,),
            in_specs=[
                pl.BlockSpec((B, H), const2),             # h0
                pl.BlockSpec((B, T, H), const3),          # encoder outputs
                pl.BlockSpec((B * T, H), const2),         # pre-flattened encoder
                pl.BlockSpec((Vr, E), const2),            # embedding table (resident)
                pl.BlockSpec((H, H), const2),             # Wh^T
                pl.BlockSpec((H, H), const2),             # We^T
                pl.BlockSpec((1, H), const2),             # attn bias
                pl.BlockSpec((1, H), const2),             # attn v
                pl.BlockSpec((E, 3 * H), const2),         # W_ie^T
                pl.BlockSpec((H, 3 * H), const2),         # W_ic^T
                pl.BlockSpec((H, 3 * H), const2),         # W_hh^T
                pl.BlockSpec((1, 2 * H), const2),         # folded b_rz
                pl.BlockSpec((1, H), const2),             # b_in
                pl.BlockSpec((1, H), const2),             # b_hn
            ],
            out_specs=pl.BlockSpec((None, B, H), lambda s, wi: (s, 0, 0)),
            scratch_shapes=[
                pltpu.VMEM((B, H), jnp.float32),          # carried hidden
                pltpu.VMEM((B, T, H), jnp.float32),       # projected encoder (+bias)
                pltpu.VMEM((B, E), cdt),                  # gathered embedding rows
            ],
        ),
        compiler_params=pltpu.CompilerParams(
            dimension_semantics=("arbitrary",),           # recurrence is sequential
            vmem_limit_bytes=32 * 1024 * 1024,
        ),
        cost_estimate=pl.CostEstimate(flops=rec_flops, transcendentals=rec_transc,
                                      bytes_accessed=rec_bytes),
    )(wi_flat, h0, enc_bth, enc_flat, emb_t, wh_t, we_t, attn_b, attn_v,
      w_ie_t, w_ic_t, w_hh_t, b_rz, b_in, b_hn)

    # ----------------- phase 2: projection over all S*B rows ------------------
    v_pad = _round_up(V, 128)
    out_w_t = jnp.pad(params["out_w"].T, ((0, 0), (0, v_pad - V))).astype(cdt)  # (H, Vp)
    out_b = jnp.pad(params["out_b"].astype(jnp.float32), (0, v_pad - V),
                    constant_values=-1e30).reshape(1, v_pad)

    SB = S * B
    tm = min(_round_up(tile_m, 8), _round_up(SB, 8))
    SBp = _round_up(SB, tm)
    h_flat = h_all.reshape(SB, H)
    if SBp != SB:
        h_flat = jnp.pad(h_flat, ((0, SBp - SB), (0, 0)))

    proj_bytes = int(4 * h_flat.size + out_w_t.size * itm + 4 * out_b.size + 4 * SBp * v_pad)
    logp_pad = pl.pallas_call(
        _projection_kernel,
        out_shape=jax.ShapeDtypeStruct((SBp, v_pad), jnp.float32),
        grid_spec=pltpu.PrefetchScalarGridSpec(
            num_scalar_prefetch=0,
            grid=(SBp // tm,),
            in_specs=[
                pl.BlockSpec((tm, H), lambda i: (i, 0)),      # hidden rows (tiled)
                pl.BlockSpec((H, v_pad), lambda i: (0, 0)),   # out W^T (resident)
                pl.BlockSpec((1, v_pad), lambda i: (0, 0)),   # out bias (resident)
            ],
            out_specs=pl.BlockSpec((tm, v_pad), lambda i: (i, 0)),
        ),
        compiler_params=pltpu.CompilerParams(
            dimension_semantics=("parallel",),            # row tiles are independent
            vmem_limit_bytes=32 * 1024 * 1024,
        ),
        cost_estimate=pl.CostEstimate(flops=2 * SBp * H * v_pad,
                                      transcendentals=SBp * v_pad,
                                      bytes_accessed=proj_bytes),
    )(h_flat, out_w_t, out_b)

    logp = logp_pad[:SB, :V].reshape(S, B, V)
    return logp, h_all


def bahdanau_decoder_step(word_input, last_hidden, encoder_outputs, params, **kwargs):
    """Module-faithful single-step API: returns (log_probs (B,V), hidden (1,B,H))."""
    logp, h_all = bahdanau_decoder_decode(word_input[None, :], last_hidden,
                                          encoder_outputs, params, **kwargs)
    return logp[0], h_all[-1][None]


# -------------------------- pure-JAX reference --------------------------------
def reference_decode(word_inputs, last_hidden, encoder_outputs, params):
    H = last_hidden.shape[-1]
    enc = jnp.transpose(encoder_outputs, (1, 0, 2))
    h = last_hidden[-1]
    B, T, _ = enc.shape
    logps, hs = [], []
    for s in range(word_inputs.shape[0]):
        emb = params["embedding"][word_inputs[s]]
        Hrep = jnp.broadcast_to(h[:, None, :], (B, T, H))
        cat = jnp.concatenate([Hrep, enc], axis=-1)
        energy = jnp.tanh(cat @ params["attn_w"].T + params["attn_b"])
        scores = jnp.einsum("bth,h->bt", energy, params["attn_v"])
        attn_w = jax.nn.softmax(scores, axis=1)
        ctx = jnp.einsum("bt,bth->bh", attn_w, enc)
        x = jnp.concatenate([emb, ctx], axis=-1)
        gi = x @ params["w_ih"].T + params["b_ih"]
        gh = h @ params["w_hh"].T + params["b_hh"]
        r = jax.nn.sigmoid(gi[:, :H] + gh[:, :H])
        z = jax.nn.sigmoid(gi[:, H:2 * H] + gh[:, H:2 * H])
        n = jnp.tanh(gi[:, 2 * H:] + r * gh[:, 2 * H:])
        h = (1.0 - z) * n + z * h
        logits = h @ params["out_w"].T + params["out_b"]
        logps.append(jax.nn.log_softmax(logits, axis=1))
        hs.append(h)
    return jnp.stack(logps), jnp.stack(hs)


# --------------------------------- main ---------------------------------------
if __name__ == "__main__":
    B, T, H, E, V, S = 8, 16, 128, 128, 1000, 6   # batch, src len, hidden, embed, vocab, steps
    n_layers = 1

    key = jax.random.PRNGKey(0)
    ks = jax.random.split(key, 13)
    params = {
        "embedding": jax.random.normal(ks[0], (V, E), jnp.float32) * 0.1,
        "attn_w":    jax.random.normal(ks[1], (H, 2 * H), jnp.float32) * 0.05,
        "attn_b":    jax.random.normal(ks[2], (H,), jnp.float32) * 0.05,
        "attn_v":    jax.random.normal(ks[3], (H,), jnp.float32) * (1.0 / math.sqrt(H)),
        "w_ih":      jax.random.normal(ks[4], (3 * H, E + H), jnp.float32) * 0.05,
        "w_hh":      jax.random.normal(ks[5], (3 * H, H), jnp.float32) * 0.05,
        "b_ih":      jax.random.normal(ks[6], (3 * H,), jnp.float32) * 0.05,
        "b_hh":      jax.random.normal(ks[7], (3 * H,), jnp.float32) * 0.05,
        "out_w":     jax.random.normal(ks[8], (V, H), jnp.float32) * 0.05,
        "out_b":     jax.random.normal(ks[9], (V,), jnp.float32) * 0.05,
    }
    word_inputs = jax.random.randint(ks[10], (S, B), 0, V, jnp.int32)
    last_hidden = jax.random.normal(ks[11], (n_layers, B, H), jnp.float32)
    encoder_outputs = jax.random.normal(ks[12], (T, B, H), jnp.float32)

    # fused multi-step decode, f32 compute
    logp, h_all = bahdanau_decoder_decode(word_inputs, last_hidden, encoder_outputs, params)
    jax.block_until_ready((logp, h_all))

    logp_ref, h_ref = reference_decode(word_inputs, last_hidden, encoder_outputs, params)
    np.testing.assert_allclose(np.asarray(logp), np.asarray(logp_ref), rtol=5e-3, atol=5e-3)
    np.testing.assert_allclose(np.asarray(h_all), np.asarray(h_ref), rtol=5e-3, atol=5e-3)

    # module-faithful single-step API
    logp1, hid1 = bahdanau_decoder_step(word_inputs[0], last_hidden, encoder_outputs, params)
    jax.block_until_ready((logp1, hid1))
    np.testing.assert_allclose(np.asarray(logp1), np.asarray(logp_ref[0]), rtol=5e-3, atol=5e-3)
    np.testing.assert_allclose(np.asarray(hid1[0]), np.asarray(h_ref[0]), rtol=5e-3, atol=5e-3)

    # bf16 weight/activation path (f32 accumulation): halves the only real HBM streams
    logp_bf, h_bf = bahdanau_decoder_decode(word_inputs, last_hidden, encoder_outputs, params,
                                            compute_dtype=jnp.bfloat16)
    jax.block_until_ready((logp_bf, h_bf))
    np.testing.assert_allclose(np.asarray(logp_bf), np.asarray(logp_ref), rtol=1e-1, atol=1e-1)
    np.testing.assert_allclose(np.asarray(h_bf), np.asarray(h_ref), rtol=1e-1, atol=1e-1)

    print("KERNEL_OK")
</pallas_src>

<mosaic_0001>
module attributes {stable_mosaic.version = 11 : i64} {
  func.func @_recurrence_kernel(%arg0: i32, %arg1: memref<48xi32, #tpu.memory_space<smem>>, %arg2: memref<8x128xf32, #tpu.memory_space<vmem>>, %arg3: memref<8x16x128xf32, #tpu.memory_space<vmem>>, %arg4: memref<128x128xf32, #tpu.memory_space<vmem>>, %arg5: memref<1000x128xf32, #tpu.memory_space<vmem>>, %arg6: memref<128x128xf32, #tpu.memory_space<vmem>>, %arg7: memref<128x128xf32, #tpu.memory_space<vmem>>, %arg8: memref<1x128xf32, #tpu.memory_space<vmem>>, %arg9: memref<1x128xf32, #tpu.memory_space<vmem>>, %arg10: memref<128x384xf32, #tpu.memory_space<vmem>>, %arg11: memref<128x384xf32, #tpu.memory_space<vmem>>, %arg12: memref<128x384xf32, #tpu.memory_space<vmem>>, %arg13: memref<1x256xf32, #tpu.memory_space<vmem>>, %arg14: memref<1x128xf32, #tpu.memory_space<vmem>>, %arg15: memref<1x128xf32, #tpu.memory_space<vmem>>, %arg16: memref<1x8x128xf32, #tpu.memory_space<vmem>>, %arg17: memref<8x128xf32, #tpu.memory_space<vmem>>, %arg18: memref<8x16x128xf32, #tpu.memory_space<vmem>>, %arg19: memref<8x128xf32, #tpu.memory_space<vmem>>) attributes {dimension_semantics = [#tpu.dimension_semantics<arbitrary>], iteration_bounds = array<i64: 6>, scalar_prefetch = 1 : i64, scratch_operands = 3 : i64, tpu.core_type = #tpu.core_type<tc>, window_params = [{pipeline_mode = #tpu.pipeline_mode<synchronous>, transform_indices = @transform_0, window_bounds = array<i64: 8, 128>}, {pipeline_mode = #tpu.pipeline_mode<synchronous>, transform_indices = @transform_1, window_bounds = array<i64: 8, 16, 128>}, {pipeline_mode = #tpu.pipeline_mode<synchronous>, transform_indices = @transform_2, window_bounds = array<i64: 128, 128>}, {pipeline_mode = #tpu.pipeline_mode<synchronous>, transform_indices = @transform_3, window_bounds = array<i64: 1000, 128>}, {pipeline_mode = #tpu.pipeline_mode<synchronous>, transform_indices = @transform_4, window_bounds = array<i64: 128, 128>}, {pipeline_mode = #tpu.pipeline_mode<synchronous>, transform_indices = @transform_5, window_bounds = array<i64: 128, 128>}, {pipeline_mode = #tpu.pipeline_mode<synchronous>, transform_indices = @transform_6, window_bounds = array<i64: 1, 128>}, {pipeline_mode = #tpu.pipeline_mode<synchronous>, transform_indices = @transform_7, window_bounds = array<i64: 1, 128>}, {pipeline_mode = #tpu.pipeline_mode<synchronous>, transform_indices = @transform_8, window_bounds = array<i64: 128, 384>}, {pipeline_mode = #tpu.pipeline_mode<synchronous>, transform_indices = @transform_9, window_bounds = array<i64: 128, 384>}, {pipeline_mode = #tpu.pipeline_mode<synchronous>, transform_indices = @transform_10, window_bounds = array<i64: 128, 384>}, {pipeline_mode = #tpu.pipeline_mode<synchronous>, transform_indices = @transform_11, window_bounds = array<i64: 1, 256>}, {pipeline_mode = #tpu.pipeline_mode<synchronous>, transform_indices = @transform_12, window_bounds = array<i64: 1, 128>}, {pipeline_mode = #tpu.pipeline_mode<synchronous>, transform_indices = @transform_13, window_bounds = array<i64: 1, 128>}, {transform_indices = @transform_14, window_bounds = array<i64: 1, 8, 128>}]} {
    %c0_i32 = arith.constant 0 : i32
    %0 = arith.cmpi eq, %arg0, %c0_i32 : i32
    %1 = arith.extui %0 : i1 to i32
    %c0_i32_0 = arith.constant 0 : i32
    %2 = arith.cmpi ne, %1, %c0_i32_0 : i32
    scf.if %2 {
      %c0_65 = arith.constant 0 : index
      %c0_66 = arith.constant 0 : index
      %128 = vector.load %arg2[%c0_65, %c0_66] : memref<8x128xf32, #tpu.memory_space<vmem>>, vector<8x128xf32>
      %c0_67 = arith.constant 0 : index
      %c0_68 = arith.constant 0 : index
      %129 = vector.load %arg17[%c0_67, %c0_68] : memref<8x128xf32, #tpu.memory_space<vmem>>, vector<8x128xf32>
      tpu.vector_store %arg17[%c0_67, %c0_68], %128 {strides = array<i32>} : memref<8x128xf32, #tpu.memory_space<vmem>>, vector<8x128xf32>,
      %c0_69 = arith.constant 0 : index
      %c0_70 = arith.constant 0 : index
      %130 = vector.load %arg4[%c0_69, %c0_70] : memref<128x128xf32, #tpu.memory_space<vmem>>, vector<128x128xf32>
      %c0_71 = arith.constant 0 : index
      %c0_72 = arith.constant 0 : index
      %131 = vector.load %arg7[%c0_71, %c0_72] : memref<128x128xf32, #tpu.memory_space<vmem>>, vector<128x128xf32>
      %cst_73 = arith.constant dense<0.000000e+00> : vector<128x128xf32>
      %132 = tpu.matmul %130, %131, %cst_73 {dimension_numbers = #tpu.dot_dimension_numbers<[1], [0], [0], [1], [0, 0, 1, 1], [], []>} : vector<128x128xf32>, vector<128x128xf32>, vector<128x128xf32> -> vector<128x128xf32>
      %133 = vector.shape_cast %132 : vector<128x128xf32> to vector<8x16x128xf32>
      %c0_74 = arith.constant 0 : index
      %c0_75 = arith.constant 0 : index
      %134 = vector.load %arg8[%c0_74, %c0_75] : memref<1x128xf32, #tpu.memory_space<vmem>>, vector<1x128xf32>
      %135 = vector.shape_cast %134 : vector<1x128xf32> to vector<1x1x128xf32>
      %136 = vector.broadcast %135 : vector<1x1x128xf32> to vector<8x16x128xf32>
      %137 = arith.addf %133, %136 : vector<8x16x128xf32>
      %c0_76 = arith.constant 0 : index
      %c0_77 = arith.constant 0 : index
      %c0_78 = arith.constant 0 : index
      %138 = vector.load %arg18[%c0_76, %c0_77, %c0_78] : memref<8x16x128xf32, #tpu.memory_space<vmem>>, vector<8x16x128xf32>
      tpu.vector_store %arg18[%c0_76, %c0_77, %c0_78], %137 {strides = array<i32>} : memref<8x16x128xf32, #tpu.memory_space<vmem>>, vector<8x16x128xf32>,
    } else {
    }
    %c8_i32 = arith.constant 8 : i32
    %3 = arith.muli %arg0, %c8_i32 : i32
    %c0_i32_1 = arith.constant 0 : i32
    %4 = arith.addi %3, %c0_i32_1 : i32
    %5 = arith.index_cast %4 : i32 to index
    %6 = memref.load %arg1[%5] : memref<48xi32, #tpu.memory_space<smem>>
    %7 = arith.index_cast %6 : i32 to index
    %c0 = arith.constant 0 : index
    %8 = vector.load %arg5[%7, %c0] : memref<1000x128xf32, #tpu.memory_space<vmem>>, vector<1x128xf32>
    %c0_2 = arith.constant 0 : index
    %c0_3 = arith.constant 0 : index
    %9 = vector.load %arg19[%c0_2, %c0_3] : memref<8x128xf32, #tpu.memory_space<vmem>>, vector<1x128xf32>
    tpu.vector_store %arg19[%c0_2, %c0_3], %8 {strides = array<i32>} : memref<8x128xf32, #tpu.memory_space<vmem>>, vector<1x128xf32>,
    %c8_i32_4 = arith.constant 8 : i32
    %10 = arith.muli %arg0, %c8_i32_4 : i32
    %c1_i32 = arith.constant 1 : i32
    %11 = arith.addi %10, %c1_i32 : i32
    %12 = arith.index_cast %11 : i32 to index
    %13 = memref.load %arg1[%12] : memref<48xi32, #tpu.memory_space<smem>>
    %14 = arith.index_cast %13 : i32 to index
    %c0_5 = arith.constant 0 : index
    %15 = vector.load %arg5[%14, %c0_5] : memref<1000x128xf32, #tpu.memory_space<vmem>>, vector<1x128xf32>
    %c1 = arith.constant 1 : index
    %c0_6 = arith.constant 0 : index
    %16 = vector.load %arg19[%c1, %c0_6] : memref<8x128xf32, #tpu.memory_space<vmem>>, vector<1x128xf32>
    tpu.vector_store %arg19[%c1, %c0_6], %15 {strides = array<i32>} : memref<8x128xf32, #tpu.memory_space<vmem>>, vector<1x128xf32>,
    %c8_i32_7 = arith.constant 8 : i32
    %17 = arith.muli %arg0, %c8_i32_7 : i32
    %c2_i32 = arith.constant 2 : i32
    %18 = arith.addi %17, %c2_i32 : i32
    %19 = arith.index_cast %18 : i32 to index
    %20 = memref.load %arg1[%19] : memref<48xi32, #tpu.memory_space<smem>>
    %21 = arith.index_cast %20 : i32 to index
    %c0_8 = arith.constant 0 : index
    %22 = vector.load %arg5[%21, %c0_8] : memref<1000x128xf32, #tpu.memory_space<vmem>>, vector<1x128xf32>
    %c2 = arith.constant 2 : index
    %c0_9 = arith.constant 0 : index
    %23 = vector.load %arg19[%c2, %c0_9] : memref<8x128xf32, #tpu.memory_space<vmem>>, vector<1x128xf32>
    tpu.vector_store %arg19[%c2, %c0_9], %22 {strides = array<i32>} : memref<8x128xf32, #tpu.memory_space<vmem>>, vector<1x128xf32>,
    %c8_i32_10 = arith.constant 8 : i32
    %24 = arith.muli %arg0, %c8_i32_10 : i32
    %c3_i32 = arith.constant 3 : i32
    %25 = arith.addi %24, %c3_i32 : i32
    %26 = arith.index_cast %25 : i32 to index
    %27 = memref.load %arg1[%26] : memref<48xi32, #tpu.memory_space<smem>>
    %28 = arith.index_cast %27 : i32 to index
    %c0_11 = arith.constant 0 : index
    %29 = vector.load %arg5[%28, %c0_11] : memref<1000x128xf32, #tpu.memory_space<vmem>>, vector<1x128xf32>
    %c3 = arith.constant 3 : index
    %c0_12 = arith.constant 0 : index
    %30 = vector.load %arg19[%c3, %c0_12] : memref<8x128xf32, #tpu.memory_space<vmem>>, vector<1x128xf32>
    tpu.vector_store %arg19[%c3, %c0_12], %29 {strides = array<i32>} : memref<8x128xf32, #tpu.memory_space<vmem>>, vector<1x128xf32>,
    %c8_i32_13 = arith.constant 8 : i32
    %31 = arith.muli %arg0, %c8_i32_13 : i32
    %c4_i32 = arith.constant 4 : i32
    %32 = arith.addi %31, %c4_i32 : i32
    %33 = arith.index_cast %32 : i32 to index
    %34 = memref.load %arg1[%33] : memref<48xi32, #tpu.memory_space<smem>>
    %35 = arith.index_cast %34 : i32 to index
    %c0_14 = arith.constant 0 : index
    %36 = vector.load %arg5[%35, %c0_14] : memref<1000x128xf32, #tpu.memory_space<vmem>>, vector<1x128xf32>
    %c4 = arith.constant 4 : index
    %c0_15 = arith.constant 0 : index
    %37 = vector.load %arg19[%c4, %c0_15] : memref<8x128xf32, #tpu.memory_space<vmem>>, vector<1x128xf32>
    tpu.vector_store %arg19[%c4, %c0_15], %36 {strides = array<i32>} : memref<8x128xf32, #tpu.memory_space<vmem>>, vector<1x128xf32>,
    %c8_i32_16 = arith.constant 8 : i32
    %38 = arith.muli %arg0, %c8_i32_16 : i32
    %c5_i32 = arith.constant 5 : i32
    %39 = arith.addi %38, %c5_i32 : i32
    %40 = arith.index_cast %39 : i32 to index
    %41 = memref.load %arg1[%40] : memref<48xi32, #tpu.memory_space<smem>>
    %42 = arith.index_cast %41 : i32 to index
    %c0_17 = arith.constant 0 : index
    %43 = vector.load %arg5[%42, %c0_17] : memref<1000x128xf32, #tpu.memory_space<vmem>>, vector<1x128xf32>
    %c5 = arith.constant 5 : index
    %c0_18 = arith.constant 0 : index
    %44 = vector.load %arg19[%c5, %c0_18] : memref<8x128xf32, #tpu.memory_space<vmem>>, vector<1x128xf32>
    tpu.vector_store %arg19[%c5, %c0_18], %43 {strides = array<i32>} : memref<8x128xf32, #tpu.memory_space<vmem>>, vector<1x128xf32>,
    %c8_i32_19 = arith.constant 8 : i32
    %45 = arith.muli %arg0, %c8_i32_19 : i32
    %c6_i32 = arith.constant 6 : i32
    %46 = arith.addi %45, %c6_i32 : i32
    %47 = arith.index_cast %46 : i32 to index
    %48 = memref.load %arg1[%47] : memref<48xi32, #tpu.memory_space<smem>>
    %49 = arith.index_cast %48 : i32 to index
    %c0_20 = arith.constant 0 : index
    %50 = vector.load %arg5[%49, %c0_20] : memref<1000x128xf32, #tpu.memory_space<vmem>>, vector<1x128xf32>
    %c6 = arith.constant 6 : index
    %c0_21 = arith.constant 0 : index
    %51 = vector.load %arg19[%c6, %c0_21] : memref<8x128xf32, #tpu.memory_space<vmem>>, vector<1x128xf32>
    tpu.vector_store %arg19[%c6, %c0_21], %50 {strides = array<i32>} : memref<8x128xf32, #tpu.memory_space<vmem>>, vector<1x128xf32>,
    %c8_i32_22 = arith.constant 8 : i32
    %52 = arith.muli %arg0, %c8_i32_22 : i32
    %c7_i32 = arith.constant 7 : i32
    %53 = arith.addi %52, %c7_i32 : i32
    %54 = arith.index_cast %53 : i32 to index
    %55 = memref.load %arg1[%54] : memref<48xi32, #tpu.memory_space<smem>>
    %56 = arith.index_cast %55 : i32 to index
    %c0_23 = arith.constant 0 : index
    %57 = vector.load %arg5[%56, %c0_23] : memref<1000x128xf32, #tpu.memory_space<vmem>>, vector<1x128xf32>
    %c7 = arith.constant 7 : index
    %c0_24 = arith.constant 0 : index
    %58 = vector.load %arg19[%c7, %c0_24] : memref<8x128xf32, #tpu.memory_space<vmem>>, vector<1x128xf32>
    tpu.vector_store %arg19[%c7, %c0_24], %57 {strides = array<i32>} : memref<8x128xf32, #tpu.memory_space<vmem>>, vector<1x128xf32>,
    %c0_25 = arith.constant 0 : index
    %c0_26 = arith.constant 0 : index
    %59 = vector.load %arg19[%c0_25, %c0_26] : memref<8x128xf32, #tpu.memory_space<vmem>>, vector<8x128xf32>
    %c0_27 = arith.constant 0 : index
    %c0_28 = arith.constant 0 : index
    %60 = vector.load %arg17[%c0_27, %c0_28] : memref<8x128xf32, #tpu.memory_space<vmem>>, vector<8x128xf32>
    %c0_29 = arith.constant 0 : index
    %c0_30 = arith.constant 0 : index
    %61 = vector.load %arg6[%c0_29, %c0_30] : memref<128x128xf32, #tpu.memory_space<vmem>>, vector<128x128xf32>
    %cst = arith.constant dense<0.000000e+00> : vector<8x128xf32>
    %62 = tpu.matmul %60, %61, %cst {dimension_numbers = #tpu.dot_dimension_numbers<[1], [0], [0], [1], [0, 0, 1, 1], [], []>} : vector<8x128xf32>, vector<128x128xf32>, vector<8x128xf32> -> vector<8x128xf32>
    %c0_31 = arith.constant 0 : index
    %c0_32 = arith.constant 0 : index
    %c0_33 = arith.constant 0 : index
    %63 = vector.load %arg18[%c0_31, %c0_32, %c0_33] : memref<8x16x128xf32, #tpu.memory_space<vmem>>, vector<8x16x128xf32>
    %64 = vector.shape_cast %62 : vector<8x128xf32> to vector<8x1x128xf32>
    %65 = vector.broadcast %64 : vector<8x1x128xf32> to vector<8x16x128xf32>
    %66 = arith.addf %63, %65 : vector<8x16x128xf32>
    %67 = math.tanh %66 : vector<8x16x128xf32>
    %c0_34 = arith.constant 0 : index
    %c0_35 = arith.constant 0 : index
    %68 = vector.load %arg9[%c0_34, %c0_35] : memref<1x128xf32, #tpu.memory_space<vmem>>, vector<1x128xf32>
    %69 = vector.shape_cast %68 : vector<1x128xf32> to vector<1x1x128xf32>
    %70 = vector.broadcast %69 : vector<1x1x128xf32> to vector<8x16x128xf32>
    %71 = arith.mulf %67, %70 : vector<8x16x128xf32>
    %cst_36 = arith.constant dense<0.000000e+00> : vector<8x16xf32>
    %72 = vector.multi_reduction <add>, %71, %cst_36 [2] : vector<8x16x128xf32> to vector<8x16xf32>
    %cst_37 = arith.constant dense<0xFF800000> : vector<8xf32>
    %73 = vector.multi_reduction <maximumf>, %72, %cst_37 [1] : vector<8x16xf32> to vector<8xf32>
    %74 = vector.shape_cast %73 : vector<8xf32> to vector<8x1xf32>
    %75 = vector.broadcast %74 : vector<8x1xf32> to vector<8x16xf32>
    %76 = arith.subf %72, %75 : vector<8x16xf32>
    %77 = math.exp %76 : vector<8x16xf32>
    %cst_38 = arith.constant dense<0.000000e+00> : vector<8xf32>
    %78 = vector.multi_reduction <add>, %77, %cst_38 [1] : vector<8x16xf32> to vector<8xf32>
    %79 = vector.shape_cast %78 : vector<8xf32> to vector<8x1xf32>
    %80 = tpu.reciprocal %79 {approx = true} : vector<8x1xf32> -> vector<8x1xf32>
    %81 = vector.broadcast %80 : vector<8x1xf32> to vector<8x16xf32>
    %82 = arith.mulf %77, %81 : vector<8x16xf32>
    %83 = vector.shape_cast %82 : vector<8x16xf32> to vector<8x16x1xf32>
    %c0_39 = arith.constant 0 : index
    %c0_40 = arith.constant 0 : index
    %c0_41 = arith.constant 0 : index
    %84 = vector.load %arg3[%c0_39, %c0_40, %c0_41] : memref<8x16x128xf32, #tpu.memory_space<vmem>>, vector<8x16x128xf32>
    %85 = vector.broadcast %83 : vector<8x16x1xf32> to vector<8x16x128xf32>
    %86 = arith.mulf %85, %84 : vector<8x16x128xf32>
    %cst_42 = arith.constant dense<0.000000e+00> : vector<8x128xf32>
    %87 = vector.multi_reduction <add>, %86, %cst_42 [1] : vector<8x16x128xf32> to vector<8x128xf32>
    %c0_43 = arith.constant 0 : index
    %c0_44 = arith.constant 0 : index
    %88 = vector.load %arg10[%c0_43, %c0_44] : memref<128x384xf32, #tpu.memory_space<vmem>>, vector<128x384xf32>
    %cst_45 = arith.constant dense<0.000000e+00> : vector<8x384xf32>
    %89 = tpu.matmul %59, %88, %cst_45 {dimension_numbers = #tpu.dot_dimension_numbers<[1], [0], [0], [1], [0, 0, 1, 1], [], []>} : vector<8x128xf32>, vector<128x384xf32>, vector<8x384xf32> -> vector<8x384xf32>
    %c0_46 = arith.constant 0 : index
    %c0_47 = arith.constant 0 : index
    %90 = vector.load %arg11[%c0_46, %c0_47] : memref<128x384xf32, #tpu.memory_space<vmem>>, vector<128x384xf32>
    %cst_48 = arith.constant dense<0.000000e+00> : vector<8x384xf32>
    %91 = tpu.matmul %87, %90, %cst_48 {dimension_numbers = #tpu.dot_dimension_numbers<[1], [0], [0], [1], [0, 0, 1, 1], [], []>} : vector<8x128xf32>, vector<128x384xf32>, vector<8x384xf32> -> vector<8x384xf32>
    %92 = arith.addf %89, %91 : vector<8x384xf32>
    %c0_49 = arith.constant 0 : index
    %c0_50 = arith.constant 0 : index
    %93 = vector.load %arg12[%c0_49, %c0_50] : memref<128x384xf32, #tpu.memory_space<vmem>>, vector<128x384xf32>
    %cst_51 = arith.constant dense<0.000000e+00> : vector<8x384xf32>
    %94 = tpu.matmul %60, %93, %cst_51 {dimension_numbers = #tpu.dot_dimension_numbers<[1], [0], [0], [1], [0, 0, 1, 1], [], []>} : vector<8x128xf32>, vector<128x384xf32>, vector<8x384xf32> -> vector<8x384xf32>
    %95 = vector.extract_strided_slice %92 {offsets = [0, 0], sizes = [8, 256], strides = [1, 1]} : vector<8x384xf32> to vector<8x256xf32>
    %96 = vector.extract_strided_slice %94 {offsets = [0, 0], sizes = [8, 256], strides = [1, 1]} : vector<8x384xf32> to vector<8x256xf32>
    %97 = arith.addf %95, %96 : vector<8x256xf32>
    %c0_52 = arith.constant 0 : index
    %c0_53 = arith.constant 0 : index
    %98 = vector.load %arg13[%c0_52, %c0_53] : memref<1x256xf32, #tpu.memory_space<vmem>>, vector<1x256xf32>
    %99 = vector.broadcast %98 : vector<1x256xf32> to vector<8x256xf32>
    %100 = arith.addf %97, %99 : vector<8x256xf32>
    %101 = arith.negf %100 : vector<8x256xf32>
    %102 = math.exp %101 : vector<8x256xf32>
    %cst_54 = arith.constant 1.000000e+00 : f32
    %103 = vector.broadcast %cst_54 : f32 to vector<8x256xf32>
    %104 = arith.addf %103, %102 : vector<8x256xf32>
    %105 = arith.divf %103, %104 : vector<8x256xf32>
    %106 = vector.extract_strided_slice %105 {offsets = [0, 0], sizes = [8, 128], strides = [1, 1]} : vector<8x256xf32> to vector<8x128xf32>
    %107 = vector.extract_strided_slice %105 {offsets = [0, 128], sizes = [8, 128], strides = [1, 1]} : vector<8x256xf32> to vector<8x128xf32>
    %108 = vector.extract_strided_slice %92 {offsets = [0, 256], sizes = [8, 128], strides = [1, 1]} : vector<8x384xf32> to vector<8x128xf32>
    %c0_55 = arith.constant 0 : index
    %c0_56 = arith.constant 0 : index
    %109 = vector.load %arg14[%c0_55, %c0_56] : memref<1x128xf32, #tpu.memory_space<vmem>>, vector<1x128xf32>
    %110 = vector.broadcast %109 : vector<1x128xf32> to vector<8x128xf32>
    %111 = arith.addf %108, %110 : vector<8x128xf32>
    %112 = vector.extract_strided_slice %94 {offsets = [0, 256], sizes = [8, 128], strides = [1, 1]} : vector<8x384xf32> to vector<8x128xf32>
    %c0_57 = arith.constant 0 : index
    %c0_58 = arith.constant 0 : index
    %113 = vector.load %arg15[%c0_57, %c0_58] : memref<1x128xf32, #tpu.memory_space<vmem>>, vector<1x128xf32>
    %114 = vector.broadcast %113 : vector<1x128xf32> to vector<8x128xf32>
    %115 = arith.addf %112, %114 : vector<8x128xf32>
    %116 = arith.mulf %106, %115 : vector<8x128xf32>
    %117 = arith.addf %111, %116 : vector<8x128xf32>
    %118 = math.tanh %117 : vector<8x128xf32>
    %cst_59 = arith.constant 1.000000e+00 : f32
    %119 = vector.broadcast %cst_59 : f32 to vector<8x128xf32>
    %120 = arith.subf %119, %107 : vector<8x128xf32>
    %121 = arith.mulf %120, %118 : vector<8x128xf32>
    %122 = arith.mulf %107, %60 : vector<8x128xf32>
    %123 = arith.addf %121, %122 : vector<8x128xf32>
    %c0_60 = arith.constant 0 : index
    %c0_61 = arith.constant 0 : index
    %124 = vector.load %arg17[%c0_60, %c0_61] : memref<8x128xf32, #tpu.memory_space<vmem>>, vector<8x128xf32>
    tpu.vector_store %arg17[%c0_60, %c0_61], %123 {strides = array<i32>} : memref<8x128xf32, #tpu.memory_space<vmem>>, vector<8x128xf32>,
    %c0_62 = arith.constant 0 : index
    %c0_63 = arith.constant 0 : index
    %c0_64 = arith.constant 0 : index
    %125 = vector.load %arg16[%c0_62, %c0_63, %c0_64] : memref<1x8x128xf32, #tpu.memory_space<vmem>>, vector<1x8x128xf32>
    %126 = vector.shape_cast %125 : vector<1x8x128xf32> to vector<8x128xf32>
    %127 = vector.shape_cast %123 : vector<8x128xf32> to vector<1x8x128xf32>
    tpu.vector_store %arg16[%c0_62, %c0_63, %c0_64], %127 {strides = array<i32>} : memref<1x8x128xf32, #tpu.memory_space<vmem>>, vector<1x8x128xf32>,
    return
  }
  func.func @transform_0(%arg0: i32, %arg1: memref<48xi32, #tpu.memory_space<smem>>) -> (i32, i32) {
    %c0_i32 = arith.constant 0 : i32
    %c0_i32_0 = arith.constant 0 : i32
    %c0_i32_1 = arith.constant 0 : i32
    return %c0_i32, %c0_i32_0 : i32, i32
  }
  func.func @transform_1(%arg0: i32, %arg1: memref<48xi32, #tpu.memory_space<smem>>) -> (i32, i32, i32) {
    %c0_i32 = arith.constant 0 : i32
    %c0_i32_0 = arith.constant 0 : i32
    %c0_i32_1 = arith.constant 0 : i32
    %c0_i32_2 = arith.constant 0 : i32
    return %c0_i32, %c0_i32_0, %c0_i32_1 : i32, i32, i32
  }
  func.func @transform_2(%arg0: i32, %arg1: memref<48xi32, #tpu.memory_space<smem>>) -> (i32, i32) {
    %c0_i32 = arith.constant 0 : i32
    %c0_i32_0 = arith.constant 0 : i32
    %c0_i32_1 = arith.constant 0 : i32
    return %c0_i32, %c0_i32_0 : i32, i32
  }
  func.func @transform_3(%arg0: i32, %arg1: memref<48xi32, #tpu.memory_space<smem>>) -> (i32, i32) {
    %c0_i32 = arith.constant 0 : i32
    %c0_i32_0 = arith.constant 0 : i32
    %c0_i32_1 = arith.constant 0 : i32
    return %c0_i32, %c0_i32_0 : i32, i32
  }
  func.func @transform_4(%arg0: i32, %arg1: memref<48xi32, #tpu.memory_space<smem>>) -> (i32, i32) {
    %c0_i32 = arith.constant 0 : i32
    %c0_i32_0 = arith.constant 0 : i32
    %c0_i32_1 = arith.constant 0 : i32
    return %c0_i32, %c0_i32_0 : i32, i32
  }
  func.func @transform_5(%arg0: i32, %arg1: memref<48xi32, #tpu.memory_space<smem>>) -> (i32, i32) {
    %c0_i32 = arith.constant 0 : i32
    %c0_i32_0 = arith.constant 0 : i32
    %c0_i32_1 = arith.constant 0 : i32
    return %c0_i32, %c0_i32_0 : i32, i32
  }
  func.func @transform_6(%arg0: i32, %arg1: memref<48xi32, #tpu.memory_space<smem>>) -> (i32, i32) {
    %c0_i32 = arith.constant 0 : i32
    %c0_i32_0 = arith.constant 0 : i32
    %c0_i32_1 = arith.constant 0 : i32
    return %c0_i32, %c0_i32_0 : i32, i32
  }
  func.func @transform_7(%arg0: i32, %arg1: memref<48xi32, #tpu.memory_space<smem>>) -> (i32, i32) {
    %c0_i32 = arith.constant 0 : i32
    %c0_i32_0 = arith.constant 0 : i32
    %c0_i32_1 = arith.constant 0 : i32
    return %c0_i32, %c0_i32_0 : i32, i32
  }
  func.func @transform_8(%arg0: i32, %arg1: memref<48xi32, #tpu.memory_space<smem>>) -> (i32, i32) {
    %c0_i32 = arith.constant 0 : i32
    %c0_i32_0 = arith.constant 0 : i32
    %c0_i32_1 = arith.constant 0 : i32
    return %c0_i32, %c0_i32_0 : i32, i32
  }
  func.func @transform_9(%arg0: i32, %arg1: memref<48xi32, #tpu.memory_space<smem>>) -> (i32, i32) {
    %c0_i32 = arith.constant 0 : i32
    %c0_i32_0 = arith.constant 0 : i32
    %c0_i32_1 = arith.constant 0 : i32
    return %c0_i32, %c0_i32_0 : i32, i32
  }
  func.func @transform_10(%arg0: i32, %arg1: memref<48xi32, #tpu.memory_space<smem>>) -> (i32, i32) {
    %c0_i32 = arith.constant 0 : i32
    %c0_i32_0 = arith.constant 0 : i32
    %c0_i32_1 = arith.constant 0 : i32
    return %c0_i32, %c0_i32_0 : i32, i32
  }
  func.func @transform_11(%arg0: i32, %arg1: memref<48xi32, #tpu.memory_space<smem>>) -> (i32, i32) {
    %c0_i32 = arith.constant 0 : i32
    %c0_i32_0 = arith.constant 0 : i32
    %c0_i32_1 = arith.constant 0 : i32
    return %c0_i32, %c0_i32_0 : i32, i32
  }
  func.func @transform_12(%arg0: i32, %arg1: memref<48xi32, #tpu.memory_space<smem>>) -> (i32, i32) {
    %c0_i32 = arith.constant 0 : i32
    %c0_i32_0 = arith.constant 0 : i32
    %c0_i32_1 = arith.constant 0 : i32
    return %c0_i32, %c0_i32_0 : i32, i32
  }
  func.func @transform_13(%arg0: i32, %arg1: memref<48xi32, #tpu.memory_space<smem>>) -> (i32, i32) {
    %c0_i32 = arith.constant 0 : i32
    %c0_i32_0 = arith.constant 0 : i32
    %c0_i32_1 = arith.constant 0 : i32
    return %c0_i32, %c0_i32_0 : i32, i32
  }
  func.func @transform_14(%arg0: i32, %arg1: memref<48xi32, #tpu.memory_space<smem>>) -> (i32, i32, i32) {
    %c0_i32 = arith.constant 0 : i32
    %c0_i32_0 = arith.constant 0 : i32
    %c0_i32_1 = arith.constant 0 : i32
    return %arg0, %c0_i32, %c0_i32_0 : i32, i32, i32
  }
}

</mosaic_0001>

<llo_original>
// kernel: tpu_custom_call.1
$region0: #{tpu_custom_call.1}
  #allocation0 [shape = 'u32[]', space=smem, size = 0x4, offset = 0x4, fixed_abs, tag = 'smem constant byte address 0x4 - core index']
  #allocation1 [shape = 'u32[72,128]{1,0:T(1,128)}', space=vmem, size = 0x9000, scoped, tag = 'internal scratch']
  #allocation2 [shape = 'f32[8,128]{1,0:T(8,128)}', space=vmem, size = 0x1000, scoped, tag = 'scratch operand']
  #allocation3 [shape = 'f32[8,16,128]{2,1,0:T(8,128)}', space=vmem, size = 0x10000, scoped, tag = 'scratch operand']
  #allocation4 [shape = 'f32[8,128]{1,0:T(8,128)}', space=vmem, size = 0x1000, scoped, tag = 'scratch operand']
  #allocation5 [shape = 's32[1]{0}', space=sflag, size = 0x4, scoped, tag = 'scoped memory for tpu_custom_call.1']
  #allocation6 [shape = 'u8[512]{0}', space=smem, size = 0x200, scoped, tag = 'prefetched SMEM operand 0']
  %s0 = inlined_call_operand.hbm [shape: s32[48], index: 0, kind: input, shape index: {}]
  %s1 = inlined_call_operand.hbm [shape: f32[8,128], index: 1, kind: input, shape index: {}]
  %s2 = inlined_call_operand.hbm [shape: f32[8,16,128], index: 2, kind: input, shape index: {}]
  %s3 = inlined_call_operand.hbm [shape: f32[128,128], index: 3, kind: input, shape index: {}]
  %s4 = inlined_call_operand.hbm [shape: f32[1000,128], index: 4, kind: input, shape index: {}]
  %s5 = inlined_call_operand.hbm [shape: f32[128,128], index: 5, kind: input, shape index: {}]
  %s6 = inlined_call_operand.hbm [shape: f32[128,128], index: 6, kind: input, shape index: {}]
  %s7 = inlined_call_operand.vmem [shape: f32[1,128], index: 7, kind: input, shape index: {}]
  %s8 = inlined_call_operand.vmem [shape: f32[1,128], index: 8, kind: input, shape index: {}]
  %s9 = inlined_call_operand.hbm [shape: f32[128,384], index: 9, kind: input, shape index: {}]
  %s10 = inlined_call_operand.hbm [shape: f32[128,384], index: 10, kind: input, shape index: {}]
  %s11 = inlined_call_operand.hbm [shape: f32[128,384], index: 11, kind: input, shape index: {}]
  %s12 = inlined_call_operand.vmem [shape: f32[1,256], index: 12, kind: input, shape index: {}]
  %s13 = inlined_call_operand.vmem [shape: f32[1,128], index: 13, kind: input, shape index: {}]
  %s14 = inlined_call_operand.vmem [shape: f32[1,128], index: 14, kind: input, shape index: {}]
  %s15 = inlined_call_operand.hbm [shape: f32[6,8,128], index: 15, kind: output, shape index: {}]
  %s16 = sld [smem:[#allocation0]]
  $region129: #{tpu_custom_call.1} parent=0
    _
  %s18 = ssub.s32 1, %s16
  %s19 = scalar_select 0, %s18, %s16
  %s21 = sshll.u32 %s0, 4
  %s22 = int_to_ptr.hbm [resolvable:$true] %s21
  %24 = dma.hbm_to_smem %s22, 16, [#allocation6], [#allocation5]
  %26 = dma.done [#allocation5], 16
  %27 = sfence
  $region1: #{tpu_custom_call.1} parent=0
    #allocation7 [shape = 'u8[4096]{0}', space=vmem, size = 0x1000, scoped, tag = 'input window, operand 1, single buffered']
    #allocation8 [shape = 's32[2]{0}', space=sflag, size = 0x8, scoped, tag = 'scoped memory for tpu_custom_call.1']
    #allocation9 [shape = 's32[2]{0}', space=sflag, size = 0x8, scoped, tag = 'scoped memory for tpu_custom_call.1']
    #allocation10 [shape = 'u8[65536]{0}', space=vmem, size = 0x10000, scoped, tag = 'input window, operand 2, single buffered']
    #allocation11 [shape = 's32[1]{0}', space=sflag, size = 0x4, scoped, tag = 'scoped memory for tpu_custom_call.1']
    #allocation12 [shape = 'u8[65536]{0}', space=vmem, size = 0x10000, scoped, tag = 'input window, operand 3, single buffered']
    #allocation13 [shape = 'u8[512000]{0}', space=vmem, size = 0x7d000, scoped, tag = 'input window, operand 4, single buffered']
    #allocation14 [shape = 's32[1]{0}', space=sflag, size = 0x4, scoped, tag = 'scoped memory for tpu_custom_call.1']
    #allocation15 [shape = 'u8[65536]{0}', space=vmem, size = 0x10000, scoped, tag = 'input window, operand 5, single buffered']
    #allocation16 [shape = 'u8[65536]{0}', space=vmem, size = 0x10000, scoped, tag = 'input window, operand 6, single buffered']
    #allocation17 [shape = 's32[1]{0}', space=sflag, size = 0x4, scoped, tag = 'scoped memory for tpu_custom_call.1']
    #allocation18 [shape = 'u8[196608]{0}', space=vmem, size = 0x30000, scoped, tag = 'input window, operand 9, single buffered']
    #allocation19 [shape = 'u8[196608]{0}', space=vmem, size = 0x30000, scoped, tag = 'input window, operand 10, single buffered']
    #allocation20 [shape = 's32[1]{0}', space=sflag, size = 0x4, scoped, tag = 'scoped memory for tpu_custom_call.1']
    #allocation21 [shape = 'u8[196608]{0}', space=vmem, size = 0x30000, scoped, tag = 'input window, operand 11, single buffered']
    #allocation22 [shape = 'u8[8192]{0}', space=vmem, size = 0x2000, scoped, tag = 'output window, operand 0']
    %28 = vsyncpa [#allocation8], 0
    %29 = vsyncpa [#allocation11], 0
    %30 = vsyncpa [#allocation14], 0
    %31 = vsyncpa [#allocation17], 0
    %32 = vsyncpa [#allocation20], 0
    %33 = vsyncpa [#allocation9], 0
    %s34 = scalar_lea.sflag [#allocation9], 1
    %35 = vsyncpa %s34, 0
    loop: start=0, step=1, limit=8
    $region2: #{tpu_custom_call.1} parent=1 // loop_pre_header
      _
    $region3: #{tpu_custom_call.1} parent=1 // loop_header
      %s37 = sphi 0, %s41
      %p38 = scmp.ge.s32.totalorder %s37, 8
      %s45 = sphi 0, %s45
      %s47 = sphi 0, %s45
      %s48 = sphi 0, %s47
      %s62 = sphi 0, %s48
      %s66 = sphi 0, %s66
      %s68 = sphi 0, %s66
      %s69 = sphi 0, %s68
      %s83 = sphi 0, %s69
      %s87 = sphi 0, %s87
      %s89 = sphi 0, %s87
      %s90 = sphi 0, %s89
      %s104 = sphi 0, %s90
      %s108 = sphi 0, %s108
      %s110 = sphi 0, %s108
      %s111 = sphi 0, %s110
      %s125 = sphi 0, %s111
      %s129 = sphi 0, %s129
      %s131 = sphi 0, %s129
      %s132 = sphi 0, %s131
      %s146 = sphi 0, %s132
      %s150 = sphi 0, %s150
      %s152 = sphi 0, %s150
      %s153 = sphi 0, %s152
      %s167 = sphi 0, %s153
      %s171 = sphi 0, %s171
      %s173 = sphi 0, %s171
      %s174 = sphi 0, %s173
      %s188 = sphi 0, %s174
      %s192 = sphi 0, %s192
      %s194 = sphi 0, %s192
      %s195 = sphi 0, %s194
      %s209 = sphi 0, %s195
      %s213 = sphi 0, %s213
      %s215 = sphi 0, %s213
      %s216 = sphi 0, %s215
      %s230 = sphi 0, %s216
      %s234 = sphi 0, %s234
      %s236 = sphi 0, %s234
      %s237 = sphi 0, %s236
      %s251 = sphi 0, %s237
      %s255 = sphi 0, %s255
      %s257 = sphi 0, %s255
      %s258 = sphi 0, %s257
      %s272 = sphi 0, %s258
      %s276 = sphi 0, %s276
      %s278 = sphi 0, %s276
      %s279 = sphi 0, %s278
      %s293 = sphi 0, %s279
      %s297 = sphi 0, %s297
      %s299 = sphi 0, %s297
      %s300 = sphi 0, %s299
      %s314 = sphi 0, %s300
      %s318 = sphi 0, %s318
      %s320 = sphi 0, %s318
      %s321 = sphi 0, %s320
      %s335 = sphi 0, %s321
      %s341 = sphi 0, %s343
      %s344 = sphi 0, %s341
      %s345 = sphi 0, %s344
      %s361 = sphi 0, %s345
    $region4: #{tpu_custom_call.1} parent=1 // loop_header_branch
      %40 = sbr.rel (%p38) target = $region8
    $region5: #{tpu_custom_call.1} parent=1 // loop_body
      %s42 = ssub.s32 %s37, 1
      %s43 = ssub.s32 %s37, 2
      %s44 = sadd.s32 %s37, 1
      %s46 = sadd.s32 %s45, 1
      %p49 = scmp.eq.s32.totalorder %s37, 5
      %p50 = scmp.ne.s32.totalorder %s45, %s47
      %p51 = scmp.eq.s32.totalorder %s37, 0
      %p52 = por %p50, %p51
      %p53 = scmp.ne.s32.totalorder %s45, %s47
      %p54 = scmp.eq.s32.totalorder %s42, 5
      %p55 = por %p53, %p54
      %p56 = scmp.ne.s32.totalorder %s47, %s48
      %p57 = scmp.eq.s32.totalorder %s42, 0
      %p58 = por %p56, %p57
      %p59 = scmp.ne.s32.totalorder %s47, %s48
      %p60 = scmp.eq.s32.totalorder %s43, 5
      %p61 = por %p59, %p60
      %p63 = scmp.ne.s32.totalorder %s48, %s62
      %p64 = scmp.eq.s32.totalorder %s43, 0
      %p65 = por %p63, %p64
      %s67 = sadd.s32 %s66, 1
      %p70 = scmp.eq.s32.totalorder %s37, 5
      %p71 = scmp.ne.s32.totalorder %s66, %s68
      %p72 = scmp.eq.s32.totalorder %s37, 0
      %p73 = por %p71, %p72
      %p74 = scmp.ne.s32.totalorder %s66, %s68
      %p75 = scmp.eq.s32.totalorder %s42, 5
      %p76 = por %p74, %p75
      %p77 = scmp.ne.s32.totalorder %s68, %s69
      %p78 = scmp.eq.s32.totalorder %s42, 0
      %p79 = por %p77, %p78
      %p80 = scmp.ne.s32.totalorder %s68, %s69
      %p81 = scmp.eq.s32.totalorder %s43, 5
      %p82 = por %p80, %p81
      %p84 = scmp.ne.s32.totalorder %s69, %s83
      %p85 = scmp.eq.s32.totalorder %s43, 0
      %p86 = por %p84, %p85
      %s88 = sadd.s32 %s87, 1
      %p91 = scmp.eq.s32.totalorder %s37, 5
      %p92 = scmp.ne.s32.totalorder %s87, %s89
      %p93 = scmp.eq.s32.totalorder %s37, 0
      %p94 = por %p92, %p93
      %p95 = scmp.ne.s32.totalorder %s87, %s89
      %p96 = scmp.eq.s32.totalorder %s42, 5
      %p97 = por %p95, %p96
      %p98 = scmp.ne.s32.totalorder %s89, %s90
      %p99 = scmp.eq.s32.totalorder %s42, 0
      %p100 = por %p98, %p99
      %p101 = scmp.ne.s32.totalorder %s89, %s90
      %p102 = scmp.eq.s32.totalorder %s43, 5
      %p103 = por %p101, %p102
      %p105 = scmp.ne.s32.totalorder %s90, %s104
      %p106 = scmp.eq.s32.totalorder %s43, 0
      %p107 = por %p105, %p106
      %s109 = sadd.s32 %s108, 1
      %p112 = scmp.eq.s32.totalorder %s37, 5
      %p113 = scmp.ne.s32.totalorder %s108, %s110
      %p114 = scmp.eq.s32.totalorder %s37, 0
      %p115 = por %p113, %p114
      %p116 = scmp.ne.s32.totalorder %s108, %s110
      %p117 = scmp.eq.s32.totalorder %s42, 5
      %p118 = por %p116, %p117
      %p119 = scmp.ne.s32.totalorder %s110, %s111
      %p120 = scmp.eq.s32.totalorder %s42, 0
      %p121 = por %p119, %p120
      %p122 = scmp.ne.s32.totalorder %s110, %s111
      %p123 = scmp.eq.s32.totalorder %s43, 5
      %p124 = por %p122, %p123
      %p126 = scmp.ne.s32.totalorder %s111, %s125
      %p127 = scmp.eq.s32.totalorder %s43, 0
      %p128 = por %p126, %p127
      %s130 = sadd.s32 %s129, 1
      %p133 = scmp.eq.s32.totalorder %s37, 5
      %p134 = scmp.ne.s32.totalorder %s129, %s131
      %p135 = scmp.eq.s32.totalorder %s37, 0
      %p136 = por %p134, %p135
      %p137 = scmp.ne.s32.totalorder %s129, %s131
      %p138 = scmp.eq.s32.totalorder %s42, 5
      %p139 = por %p137, %p138
      %p140 = scmp.ne.s32.totalorder %s131, %s132
      %p141 = scmp.eq.s32.totalorder %s42, 0
      %p142 = por %p140, %p141
      %p143 = scmp.ne.s32.totalorder %s131, %s132
      %p144 = scmp.eq.s32.totalorder %s43, 5
      %p145 = por %p143, %p144
      %p147 = scmp.ne.s32.totalorder %s132, %s146
      %p148 = scmp.eq.s32.totalorder %s43, 0
      %p149 = por %p147, %p148
      %s151 = sadd.s32 %s150, 1
      %p154 = scmp.eq.s32.totalorder %s37, 5
      %p155 = scmp.ne.s32.totalorder %s150, %s152
      %p156 = scmp.eq.s32.totalorder %s37, 0
      %p157 = por %p155, %p156
      %p158 = scmp.ne.s32.totalorder %s150, %s152
      %p159 = scmp.eq.s32.totalorder %s42, 5
      %p160 = por %p158, %p159
      %p161 = scmp.ne.s32.totalorder %s152, %s153
      %p162 = scmp.eq.s32.totalorder %s42, 0
      %p163 = por %p161, %p162
      %p164 = scmp.ne.s32.totalorder %s152, %s153
      %p165 = scmp.eq.s32.totalorder %s43, 5
      %p166 = por %p164, %p165
      %p168 = scmp.ne.s32.totalorder %s153, %s167
      %p169 = scmp.eq.s32.totalorder %s43, 0
      %p170 = por %p168, %p169
      %s172 = sadd.s32 %s171, 1
      %p175 = scmp.eq.s32.totalorder %s37, 5
      %p176 = scmp.ne.s32.totalorder %s171, %s173
      %p177 = scmp.eq.s32.totalorder %s37, 0
      %p178 = por %p176, %p177
      %p179 = scmp.ne.s32.totalorder %s171, %s173
      %p180 = scmp.eq.s32.totalorder %s42, 5
      %p181 = por %p179, %p180
      %p182 = scmp.ne.s32.totalorder %s173, %s174
      %p183 = scmp.eq.s32.totalorder %s42, 0
      %p184 = por %p182, %p183
      %p185 = scmp.ne.s32.totalorder %s173, %s174
      %p186 = scmp.eq.s32.totalorder %s43, 5
      %p187 = por %p185, %p186
      %p189 = scmp.ne.s32.totalorder %s174, %s188
      %p190 = scmp.eq.s32.totalorder %s43, 0
      %p191 = por %p189, %p190
      %s193 = sadd.s32 %s192, 1
      %p196 = scmp.eq.s32.totalorder %s37, 5
      %p197 = scmp.ne.s32.totalorder %s192, %s194
      %p198 = scmp.eq.s32.totalorder %s37, 0
      %p199 = por %p197, %p198
      %p200 = scmp.ne.s32.totalorder %s192, %s194
      %p201 = scmp.eq.s32.totalorder %s42, 5
      %p202 = por %p200, %p201
      %p203 = scmp.ne.s32.totalorder %s194, %s195
      %p204 = scmp.eq.s32.totalorder %s42, 0
      %p205 = por %p203, %p204
      %p206 = scmp.ne.s32.totalorder %s194, %s195
      %p207 = scmp.eq.s32.totalorder %s43, 5
      %p208 = por %p206, %p207
      %p210 = scmp.ne.s32.totalorder %s195, %s209
      %p211 = scmp.eq.s32.totalorder %s43, 0
      %p212 = por %p210, %p211
      %s214 = sadd.s32 %s213, 1
      %p217 = scmp.eq.s32.totalorder %s37, 5
      %p218 = scmp.ne.s32.totalorder %s213, %s215
      %p219 = scmp.eq.s32.totalorder %s37, 0
      %p220 = por %p218, %p219
      %p221 = scmp.ne.s32.totalorder %s213, %s215
      %p222 = scmp.eq.s32.totalorder %s42, 5
      %p223 = por %p221, %p222
      %p224 = scmp.ne.s32.totalorder %s215, %s216
      %p225 = scmp.eq.s32.totalorder %s42, 0
      %p226 = por %p224, %p225
      %p227 = scmp.ne.s32.totalorder %s215, %s216
      %p228 = scmp.eq.s32.totalorder %s43, 5
      %p229 = por %p227, %p228
      %p231 = scmp.ne.s32.totalorder %s216, %s230
      %p232 = scmp.eq.s32.totalorder %s43, 0
      %p233 = por %p231, %p232
      %s235 = sadd.s32 %s234, 1
      %p238 = scmp.eq.s32.totalorder %s37, 5
      %p239 = scmp.ne.s32.totalorder %s234, %s236
      %p240 = scmp.eq.s32.totalorder %s37, 0
      %p241 = por %p239, %p240
      %p242 = scmp.ne.s32.totalorder %s234, %s236
      %p243 = scmp.eq.s32.totalorder %s42, 5
      %p244 = por %p242, %p243
      %p245 = scmp.ne.s32.totalorder %s236, %s237
      %p246 = scmp.eq.s32.totalorder %s42, 0
      %p247 = por %p245, %p246
      %p248 = scmp.ne.s32.totalorder %s236, %s237
      %p249 = scmp.eq.s32.totalorder %s43, 5
      %p250 = por %p248, %p249
      %p252 = scmp.ne.s32.totalorder %s237, %s251
      %p253 = scmp.eq.s32.totalorder %s43, 0
      %p254 = por %p252, %p253
      %s256 = sadd.s32 %s255, 1
      %p259 = scmp.eq.s32.totalorder %s37, 5
      %p260 = scmp.ne.s32.totalorder %s255, %s257
      %p261 = scmp.eq.s32.totalorder %s37, 0
      %p262 = por %p260, %p261
      %p263 = scmp.ne.s32.totalorder %s255, %s257
      %p264 = scmp.eq.s32.totalorder %s42, 5
      %p265 = por %p263, %p264
      %p266 = scmp.ne.s32.totalorder %s257, %s258
      %p267 = scmp.eq.s32.totalorder %s42, 0
      %p268 = por %p266, %p267
      %p269 = scmp.ne.s32.totalorder %s257, %s258
      %p270 = scmp.eq.s32.totalorder %s43, 5
      %p271 = por %p269, %p270
      %p273 = scmp.ne.s32.totalorder %s258, %s272
      %p274 = scmp.eq.s32.totalorder %s43, 0
      %p275 = por %p273, %p274
      %s277 = sadd.s32 %s276, 1
      %p280 = scmp.eq.s32.totalorder %s37, 5
      %p281 = scmp.ne.s32.totalorder %s276, %s278
      %p282 = scmp.eq.s32.totalorder %s37, 0
      %p283 = por %p281, %p282
      %p284 = scmp.ne.s32.totalorder %s276, %s278
      %p285 = scmp.eq.s32.totalorder %s42, 5
      %p286 = por %p284, %p285
      %p287 = scmp.ne.s32.totalorder %s278, %s279
      %p288 = scmp.eq.s32.totalorder %s42, 0
      %p289 = por %p287, %p288
      %p290 = scmp.ne.s32.totalorder %s278, %s279
      %p291 = scmp.eq.s32.totalorder %s43, 5
      %p292 = por %p290, %p291
      %p294 = scmp.ne.s32.totalorder %s279, %s293
      %p295 = scmp.eq.s32.totalorder %s43, 0
      %p296 = por %p294, %p295
      %s298 = sadd.s32 %s297, 1
      %p301 = scmp.eq.s32.totalorder %s37, 5
      %p302 = scmp.ne.s32.totalorder %s297, %s299
      %p303 = scmp.eq.s32.totalorder %s37, 0
      %p304 = por %p302, %p303
      %p305 = scmp.ne.s32.totalorder %s297, %s299
      %p306 = scmp.eq.s32.totalorder %s42, 5
      %p307 = por %p305, %p306
      %p308 = scmp.ne.s32.totalorder %s299, %s300
      %p309 = scmp.eq.s32.totalorder %s42, 0
      %p310 = por %p308, %p309
      %p311 = scmp.ne.s32.totalorder %s299, %s300
      %p312 = scmp.eq.s32.totalorder %s43, 5
      %p313 = por %p311, %p312
      %p315 = scmp.ne.s32.totalorder %s300, %s314
      %p316 = scmp.eq.s32.totalorder %s43, 0
      %p317 = por %p315, %p316
      %s319 = sadd.s32 %s318, 1
      %p322 = scmp.eq.s32.totalorder %s37, 5
      %p323 = scmp.ne.s32.totalorder %s318, %s320
      %p324 = scmp.eq.s32.totalorder %s37, 0
      %p325 = por %p323, %p324
      %p326 = scmp.ne.s32.totalorder %s318, %s320
      %p327 = scmp.eq.s32.totalorder %s42, 5
      %p328 = por %p326, %p327
      %p329 = scmp.ne.s32.totalorder %s320, %s321
      %p330 = scmp.eq.s32.totalorder %s42, 0
      %p331 = por %p329, %p330
      %p332 = scmp.ne.s32.totalorder %s320, %s321
      %p333 = scmp.eq.s32.totalorder %s43, 5
      %p334 = por %p332, %p333
      %p336 = scmp.ne.s32.totalorder %s321, %s335
      %p337 = scmp.eq.s32.totalorder %s43, 0
      %p338 = por %p336, %p337
      %s339 = ssub.s32 %s37, %s44
      %p340 = scmp.eq.s32.totalorder %s339, 0
      %s342 = sadd.s32 %s341, 1
      %s343 = scalar_select %p340, %s341, %s342
      %p346 = pneg %p340
      %p347 = scmp.eq.s32.totalorder %s37, 5
      %p348 = por %p346, %p347
      %p349 = scmp.ne.s32.totalorder %s341, %s344
      %p350 = scmp.eq.s32.totalorder %s37, 0
      %p351 = por %p349, %p350
      %p352 = scmp.ne.s32.totalorder %s341, %s344
      %p353 = scmp.eq.s32.totalorder %s42, 5
      %p354 = por %p352, %p353
      %p355 = scmp.ne.s32.totalorder %s344, %s345
      %p356 = scmp.eq.s32.totalorder %s42, 0
      %p357 = por %p355, %p356
      %p358 = scmp.ne.s32.totalorder %s344, %s345
      %p359 = scmp.eq.s32.totalorder %s43, 5
      %p360 = por %p358, %p359
      %p362 = scmp.ne.s32.totalorder %s345, %s361
      %p363 = scmp.eq.s32.totalorder %s43, 0
      %p364 = por %p362, %p363
      %p365 = scmp.le.s32.totalorder 1, %s37
      %p366 = scmp.lt.s32.totalorder %s37, 7
      %p367 = pnand %p365, %p366
      %p368 = pneg %p367
      // Predicated region
      $region9: #{tpu_custom_call.1} parent=5 // pred_check
        _
      $region10: #{tpu_custom_call.1} parent=5 // pred_check_branch
        %370 = sbr.rel (%p367) target = $region12
      $region11: #{tpu_custom_call.1} parent=5 // pred_region
        %s371 = ssub.s32 %s37, 1
        // Predicated region
        $region13: #{tpu_custom_call.1} parent=11 // pred_check
          %p372 = pneg %p58
        $region14: #{tpu_custom_call.1} parent=11 // pred_check_branch
          %374 = sbr.rel (%p372) target = $region16
        $region15: #{tpu_custom_call.1} parent=11 // pred_region
          %376 = vsyncadd [#allocation8], 0
          %s378 = sshll.u32 %s1, 4
          %s379 = int_to_ptr.hbm [resolvable:$true] %s378
          %s380 = sshll.u32 [#allocation7], 4
          %s381 = int_to_ptr.vmem [resolvable:$true] %s380
          %383 = dma.hbm_to_vmem [thread:$0]  %s379, 128, %s381, [#allocation8]
        $region16: #{tpu_custom_call.1} parent=11 // pred_fallthru
          _
        // Predicated region
        $region17: #{tpu_custom_call.1} parent=11 // pred_check
          %p384 = pneg %p79
        $region18: #{tpu_custom_call.1} parent=11 // pred_check_branch
          %386 = sbr.rel (%p384) target = $region20
        $region19: #{tpu_custom_call.1} parent=11 // pred_region
          %388 = vsyncadd [#allocation11], 0
          %s389 = sshll.u32 %s2, 4
          %s390 = int_to_ptr.hbm [resolvable:$true] %s389
          %s391 = sshll.u32 [#allocation10], 4
          %s392 = int_to_ptr.vmem [resolvable:$true] %s391
          %397 = dma.hbm_to_vmem [thread:$0]  %s390, 2048, %s392, [#allocation11], 128, 128, 8
        $region20: #{tpu_custom_call.1} parent=11 // pred_fallthru
          _
        // Predicated region
        $region21: #{tpu_custom_call.1} parent=11 // pred_check
          %p398 = pneg %p100
        $region22: #{tpu_custom_call.1} parent=11 // pred_check_branch
          %400 = sbr.rel (%p398) target = $region24
        $region23: #{tpu_custom_call.1} parent=11 // pred_region
          %402 = vsyncadd [#allocation11], 0
          %s403 = sshll.u32 %s3, 4
          %s404 = int_to_ptr.hbm [resolvable:$true] %s403
          %s405 = sshll.u32 [#allocation12], 4
          %s406 = int_to_ptr.vmem [resolvable:$true] %s405
          %411 = dma.hbm_to_vmem [thread:$0]  %s404, 2048, %s406, [#allocation11], 128, 128, 8
        $region24: #{tpu_custom_call.1} parent=11 // pred_fallthru
          _
        // Predicated region
        $region25: #{tpu_custom_call.1} parent=11 // pred_check
          %p412 = pneg %p121
        $region26: #{tpu_custom_call.1} parent=11 // pred_check_branch
          %414 = sbr.rel (%p412) target = $region28
        $region27: #{tpu_custom_call.1} parent=11 // pred_region
          %416 = vsyncadd [#allocation14], 0
          %s417 = sshll.u32 %s4, 4
          %s418 = int_to_ptr.hbm [resolvable:$true] %s417
          %s419 = sshll.u32 [#allocation13], 4
          %s420 = int_to_ptr.vmem [resolvable:$true] %s419
          %425 = dma.hbm_to_vmem [thread:$0]  %s418, 16000, %s420, [#allocation14], 128, 128, 8
        $region28: #{tpu_custom_call.1} parent=11 // pred_fallthru
          _
        // Predicated region
        $region29: #{tpu_custom_call.1} parent=11 // pred_check
          %p426 = pneg %p142
        $region30: #{tpu_custom_call.1} parent=11 // pred_check_branch
          %428 = sbr.rel (%p426) target = $region32
        $region31: #{tpu_custom_call.1} parent=11 // pred_region
          %430 = vsyncadd [#allocation14], 0
          %s431 = sshll.u32 %s5, 4
          %s432 = int_to_ptr.hbm [resolvable:$true] %s431
          %s433 = sshll.u32 [#allocation15], 4
          %s434 = int_to_ptr.vmem [resolvable:$true] %s433
          %439 = dma.hbm_to_vmem [thread:$0]  %s432, 2048, %s434, [#allocation14], 128, 128, 8
        $region32: #{tpu_custom_call.1} parent=11 // pred_fallthru
          _
        // Predicated region
        $region33: #{tpu_custom_call.1} parent=11 // pred_check
          %p440 = pneg %p163
        $region34: #{tpu_custom_call.1} parent=11 // pred_check_branch
          %442 = sbr.rel (%p440) target = $region36
        $region35: #{tpu_custom_call.1} parent=11 // pred_region
          %444 = vsyncadd [#allocation17], 0
          %s445 = sshll.u32 %s6, 4
          %s446 = int_to_ptr.hbm [resolvable:$true] %s445
          %s447 = sshll.u32 [#allocation16], 4
          %s448 = int_to_ptr.vmem [resolvable:$true] %s447
          %453 = dma.hbm_to_vmem [thread:$0]  %s446, 2048, %s448, [#allocation17], 128, 128, 8
        $region36: #{tpu_custom_call.1} parent=11 // pred_fallthru
          _
        // Predicated region
        $region37: #{tpu_custom_call.1} parent=11 // pred_check
          %p454 = pneg %p184
        $region38: #{tpu_custom_call.1} parent=11 // pred_check_branch
          %456 = sbr.rel (%p454) target = $region40
        $region39: #{tpu_custom_call.1} parent=11 // pred_region
          _
        $region40: #{tpu_custom_call.1} parent=11 // pred_fallthru
          _
        // Predicated region
        $region41: #{tpu_custom_call.1} parent=11 // pred_check
          %p457 = pneg %p205
        $region42: #{tpu_custom_call.1} parent=11 // pred_check_branch
          %459 = sbr.rel (%p457) target = $region44
        $region43: #{tpu_custom_call.1} parent=11 // pred_region
          _
        $region44: #{tpu_custom_call.1} parent=11 // pred_fallthru
          _
        // Predicated region
        $region45: #{tpu_custom_call.1} parent=11 // pred_check
          %p460 = pneg %p226
        $region46: #{tpu_custom_call.1} parent=11 // pred_check_branch
          %462 = sbr.rel (%p460) target = $region48
        $region47: #{tpu_custom_call.1} parent=11 // pred_region
          %464 = vsyncadd [#allocation17], 0
          %s465 = sshll.u32 %s9, 4
          %s466 = int_to_ptr.hbm [resolvable:$true] %s465
          %s467 = sshll.u32 [#allocation18], 4
          %s468 = int_to_ptr.vmem [resolvable:$true] %s467
          %473 = dma.hbm_to_vmem [thread:$0]  %s466, 6144, %s468, [#allocation17], 384, 384, 24
        $region48: #{tpu_custom_call.1} parent=11 // pred_fallthru
          _
        // Predicated region
        $region49: #{tpu_custom_call.1} parent=11 // pred_check
          %p474 = pneg %p247
        $region50: #{tpu_custom_call.1} parent=11 // pred_check_branch
          %476 = sbr.rel (%p474) target = $region52
        $region51: #{tpu_custom_call.1} parent=11 // pred_region
          %478 = vsyncadd [#allocation20], 0
          %s479 = sshll.u32 %s10, 4
          %s480 = int_to_ptr.hbm [resolvable:$true] %s479
          %s481 = sshll.u32 [#allocation19], 4
          %s482 = int_to_ptr.vmem [resolvable:$true] %s481
          %487 = dma.hbm_to_vmem [thread:$0]  %s480, 6144, %s482, [#allocation20], 384, 384, 24
        $region52: #{tpu_custom_call.1} parent=11 // pred_fallthru
          _
        // Predicated region
        $region53: #{tpu_custom_call.1} parent=11 // pred_check
          %p488 = pneg %p268
        $region54: #{tpu_custom_call.1} parent=11 // pred_check_branch
          %490 = sbr.rel (%p488) target = $region56
        $region55: #{tpu_custom_call.1} parent=11 // pred_region
          %492 = vsyncadd [#allocation20], 0
          %s493 = sshll.u32 %s11, 4
          %s494 = int_to_ptr.hbm [resolvable:$true] %s493
          %s495 = sshll.u32 [#allocation21], 4
          %s496 = int_to_ptr.vmem [resolvable:$true] %s495
          %501 = dma.hbm_to_vmem [thread:$0]  %s494, 6144, %s496, [#allocation20], 384, 384, 24
        $region56: #{tpu_custom_call.1} parent=11 // pred_fallthru
          _
        // Predicated region
        $region57: #{tpu_custom_call.1} parent=11 // pred_check
          %p502 = pneg %p289
        $region58: #{tpu_custom_call.1} parent=11 // pred_check_branch
          %504 = sbr.rel (%p502) target = $region60
        $region59: #{tpu_custom_call.1} parent=11 // pred_region
          _
        $region60: #{tpu_custom_call.1} parent=11 // pred_fallthru
          _
        // Predicated region
        $region61: #{tpu_custom_call.1} parent=11 // pred_check
          %p505 = pneg %p310
        $region62: #{tpu_custom_call.1} parent=11 // pred_check_branch
          %507 = sbr.rel (%p505) target = $region64
        $region63: #{tpu_custom_call.1} parent=11 // pred_region
          _
        $region64: #{tpu_custom_call.1} parent=11 // pred_fallthru
          _
        // Predicated region
        $region65: #{tpu_custom_call.1} parent=11 // pred_check
          %p508 = pneg %p331
        $region66: #{tpu_custom_call.1} parent=11 // pred_check_branch
          %510 = sbr.rel (%p508) target = $region68
        $region67: #{tpu_custom_call.1} parent=11 // pred_region
          _
        $region68: #{tpu_custom_call.1} parent=11 // pred_fallthru
          _
      $region12: #{tpu_custom_call.1} parent=5 // pred_fallthru
        _
      %p511 = scmp.lt.s32.totalorder %s37, 6
      // Predicated region
      $region69: #{tpu_custom_call.1} parent=5 // pred_check
        %p512 = pneg %p511
      $region70: #{tpu_custom_call.1} parent=5 // pred_check_branch
        %514 = sbr.rel (%p512) target = $region72
      $region71: #{tpu_custom_call.1} parent=5 // pred_region
        _
      $region72: #{tpu_custom_call.1} parent=5 // pred_fallthru
        _
      %p515 = scmp.le.s32.totalorder 1, %s37
      %p516 = scmp.lt.s32.totalorder %s37, 7
      %p517 = pnand %p515, %p516
      %p518 = pneg %p517
      // Predicated region
      $region73: #{tpu_custom_call.1} parent=5 // pred_check
        _
      $region74: #{tpu_custom_call.1} parent=5 // pred_check_branch
        %520 = sbr.rel (%p517) target = $region76
      $region75: #{tpu_custom_call.1} parent=5 // pred_region
        %s521 = ssub.s32 %s37, 1
        // Predicated region
        $region77: #{tpu_custom_call.1} parent=75 // pred_check
          %p522 = pneg %p58
        $region78: #{tpu_custom_call.1} parent=75 // pred_check_branch
          %524 = sbr.rel (%p522) target = $region80
        $region79: #{tpu_custom_call.1} parent=75 // pred_region
          %526 = dma.done [#allocation8], 128
        $region80: #{tpu_custom_call.1} parent=75 // pred_fallthru
          _
        // Predicated region
        $region81: #{tpu_custom_call.1} parent=75 // pred_check
          %p527 = pneg %p79
        $region82: #{tpu_custom_call.1} parent=75 // pred_check_branch
          %529 = sbr.rel (%p527) target = $region84
        $region83: #{tpu_custom_call.1} parent=75 // pred_region
          %531 = dma.done [#allocation11], 2048
        $region84: #{tpu_custom_call.1} parent=75 // pred_fallthru
          _
        // Predicated region
        $region85: #{tpu_custom_call.1} parent=75 // pred_check
          %p532 = pneg %p100
        $region86: #{tpu_custom_call.1} parent=75 // pred_check_branch
          %534 = sbr.rel (%p532) target = $region88
        $region87: #{tpu_custom_call.1} parent=75 // pred_region
          %536 = dma.done [#allocation11], 2048
        $region88: #{tpu_custom_call.1} parent=75 // pred_fallthru
          _
        // Predicated region
        $region89: #{tpu_custom_call.1} parent=75 // pred_check
          %p537 = pneg %p121
        $region90: #{tpu_custom_call.1} parent=75 // pred_check_branch
          %539 = sbr.rel (%p537) target = $region92
        $region91: #{tpu_custom_call.1} parent=75 // pred_region
          %541 = dma.done [#allocation14], 16000
        $region92: #{tpu_custom_call.1} parent=75 // pred_fallthru
          _
        // Predicated region
        $region93: #{tpu_custom_call.1} parent=75 // pred_check
          %p542 = pneg %p142
        $region94: #{tpu_custom_call.1} parent=75 // pred_check_branch
          %544 = sbr.rel (%p542) target = $region96
        $region95: #{tpu_custom_call.1} parent=75 // pred_region
          %546 = dma.done [#allocation14], 2048
        $region96: #{tpu_custom_call.1} parent=75 // pred_fallthru
          _
        // Predicated region
        $region97: #{tpu_custom_call.1} parent=75 // pred_check
          %p547 = pneg %p163
        $region98: #{tpu_custom_call.1} parent=75 // pred_check_branch
          %549 = sbr.rel (%p547) target = $region100
        $region99: #{tpu_custom_call.1} parent=75 // pred_region
          %551 = dma.done [#allocation17], 2048
        $region100: #{tpu_custom_call.1} parent=75 // pred_fallthru
          _
        // Predicated region
        $region101: #{tpu_custom_call.1} parent=75 // pred_check
          %p552 = pneg %p226
        $region102: #{tpu_custom_call.1} parent=75 // pred_check_branch
          %554 = sbr.rel (%p552) target = $region104
        $region103: #{tpu_custom_call.1} parent=75 // pred_region
          %556 = dma.done [#allocation17], 6144
        $region104: #{tpu_custom_call.1} parent=75 // pred_fallthru
          _
        // Predicated region
        $region105: #{tpu_custom_call.1} parent=75 // pred_check
          %p557 = pneg %p247
        $region106: #{tpu_custom_call.1} parent=75 // pred_check_branch
          %559 = sbr.rel (%p557) target = $region108
        $region107: #{tpu_custom_call.1} parent=75 // pred_region
          %561 = dma.done [#allocation20], 6144
        $region108: #{tpu_custom_call.1} parent=75 // pred_fallthru
          _
        // Predicated region
        $region109: #{tpu_custom_call.1} parent=75 // pred_check
          %p562 = pneg %p268
        $region110: #{tpu_custom_call.1} parent=75 // pred_check_branch
          %564 = sbr.rel (%p562) target = $region112
        $region111: #{tpu_custom_call.1} parent=75 // pred_region
          %566 = dma.done [#allocation20], 6144
        $region112: #{tpu_custom_call.1} parent=75 // pred_fallthru
          _
        %p567 = pneg %p58
        %p568 = pneg %p55
        %p569 = pneg %p79
        %p570 = pneg %p76
        %p571 = pneg %p100
        %p572 = pneg %p97
        %p573 = pneg %p121
        %p574 = pneg %p118
        %p575 = pneg %p142
        %p576 = pneg %p139
        %p577 = pneg %p163
        %p578 = pneg %p160
        %p579 = pneg %p184
        %p580 = pneg %p181
        %p581 = pneg %p205
        %p582 = pneg %p202
        %p583 = pneg %p226
        %p584 = pneg %p223
        %p585 = pneg %p247
        %p586 = pneg %p244
        %p587 = pneg %p268
        %p588 = pneg %p265
        %p589 = pneg %p289
        %p590 = pneg %p286
        %p591 = pneg %p310
        %p592 = pneg %p307
        %p593 = pneg %p331
        %p594 = pneg %p328
        %p595 = pneg %p357
        %p596 = pneg %p354
        %s597 = sand.u32 %s344, 1
        %s598 = scalar_lea.sflag [#allocation9], %s597
        %s599 = sand.u32 %s344, 1
        %s600 = smul.addr %s599, 8
        %s601 = scalar_lea.vmem [#allocation22], %s600
        %p602 = scmp.eq.s32.totalorder %s42, 0
        // Predicated region
        $region113: #{tpu_custom_call.1} parent=75 // pred_check
          %p603 = pneg %p602
        $region114: #{tpu_custom_call.1} parent=75 // pred_check_branch
          %605 = sbr.rel (%p603) target = $region116
        $region115: #{tpu_custom_call.1} parent=75 // pred_region
          %v606 = vld [vmem:[#allocation7] sm:$0xff]
          %607 = vst [vmem:[#allocation2] sm:$0xff] %v606
          %v608 = vld [vmem:[#allocation12] sm:$0xff]
          %v609 = vld [vmem:[#allocation12 + $0x8] sm:$0xff]
          %v610 = vld [vmem:[#allocation12 + $0x10] sm:$0xff]
          %v611 = vld [vmem:[#allocation12 + $0x18] sm:$0xff]
          %v612 = vld [vmem:[#allocation12 + $0x20] sm:$0xff]
          %v613 = vld [vmem:[#allocation12 + $0x28] sm:$0xff]
          %v614 = vld [vmem:[#allocation12 + $0x30] sm:$0xff]
          %v615 = vld [vmem:[#allocation12 + $0x38] sm:$0xff]
          %v616 = vld [vmem:[#allocation12 + $0x40] sm:$0xff]
          %v617 = vld [vmem:[#allocation12 + $0x48] sm:$0xff]
          %v618 = vld [vmem:[#allocation12 + $0x50] sm:$0xff]
          %v619 = vld [vmem:[#allocation12 + $0x58] sm:$0xff]
          %v620 = vld [vmem:[#allocation12 + $0x60] sm:$0xff]
          %v621 = vld [vmem:[#allocation12 + $0x68] sm:$0xff]
          %v622 = vld [vmem:[#allocation12 + $0x70] sm:$0xff]
          %v623 = vld [vmem:[#allocation12 + $0x78] sm:$0xff]
          %v624 = vld [vmem:[#allocation16] sm:$0xff]
          %v625 = vld [vmem:[#allocation16 + $0x8] sm:$0xff]
          %v626 = vld [vmem:[#allocation16 + $0x10] sm:$0xff]
          %v627 = vld [vmem:[#allocation16 + $0x18] sm:$0xff]
          %v628 = vld [vmem:[#allocation16 + $0x20] sm:$0xff]
          %v629 = vld [vmem:[#allocation16 + $0x28] sm:$0xff]
          %v630 = vld [vmem:[#allocation16 + $0x30] sm:$0xff]
          %v631 = vld [vmem:[#allocation16 + $0x38] sm:$0xff]
          %v632 = vld [vmem:[#allocation16 + $0x40] sm:$0xff]
          %v633 = vld [vmem:[#allocation16 + $0x48] sm:$0xff]
          %v634 = vld [vmem:[#allocation16 + $0x50] sm:$0xff]
          %v635 = vld [vmem:[#allocation16 + $0x58] sm:$0xff]
          %v636 = vld [vmem:[#allocation16 + $0x60] sm:$0xff]
          %v637 = vld [vmem:[#allocation16 + $0x68] sm:$0xff]
          %v638 = vld [vmem:[#allocation16 + $0x70] sm:$0xff]
          %v639 = vld [vmem:[#allocation16 + $0x78] sm:$0xff]
          %640 = vmatpush.msra.mxu0 %v639
          %641 = vmatpush.msra.mxu0 %v638
          %642 = vmatpush.msra.mxu0 %v637
          %643 = vmatpush.msra.mxu0 %v636
          %644 = vmatpush.msra.mxu0 %v635
          %645 = vmatpush.msra.mxu0 %v634
          %646 = vmatpush.msra.mxu0 %v633
          %647 = vmatpush.msra.mxu0 %v632
          %648 = vmatpush.msra.mxu0 %v631
          %649 = vmatpush.msra.mxu0 %v630
          %650 = vmatpush.msra.mxu0 %v629
          %651 = vmatpush.msra.mxu0 %v628
          %652 = vmatpush.msra.mxu0 %v627
          %653 = vmatpush.msra.mxu0 %v626
          %654 = vmatpush.msra.mxu0 %v625
          %655 = vmatpush.msra.mxu0 %v624
          %656 = vmatmul.f32.gmra.mxu0 %v608
          %v657 = vpop.f32.mrf.mxu0
          %v658 = vadd.f32 0.0, %v657
          %659 = vmatmul.f32.gmra.mxu0 %v609
          %v660 = vpop.f32.mrf.mxu0
          %v661 = vadd.f32 0.0, %v660
          %662 = vmatmul.f32.gmra.mxu0 %v610
          %v663 = vpop.f32.mrf.mxu0
          %v664 = vadd.f32 0.0, %v663
          %665 = vmatmul.f32.gmra.mxu0 %v611
          %v666 = vpop.f32.mrf.mxu0
          %v667 = vadd.f32 0.0, %v666
          %668 = vmatmul.f32.gmra.mxu0 %v612
          %v669 = vpop.f32.mrf.mxu0
          %v670 = vadd.f32 0.0, %v669
          %671 = vmatmul.f32.gmra.mxu0 %v613
          %v672 = vpop.f32.mrf.mxu0
          %v673 = vadd.f32 0.0, %v672
          %674 = vmatmul.f32.gmra.mxu0 %v614
          %v675 = vpop.f32.mrf.mxu0
          %v676 = vadd.f32 0.0, %v675
          %677 = vmatmul.f32.gmra.mxu0 %v615
          %v678 = vpop.f32.mrf.mxu0
          %v679 = vadd.f32 0.0, %v678
          %680 = vmatmul.f32.gmra.mxu0 %v616
          %v681 = vpop.f32.mrf.mxu0
          %v682 = vadd.f32 0.0, %v681
          %683 = vmatmul.f32.gmra.mxu0 %v617
          %v684 = vpop.f32.mrf.mxu0
          %v685 = vadd.f32 0.0, %v684
          %686 = vmatmul.f32.gmra.mxu0 %v618
          %v687 = vpop.f32.mrf.mxu0
          %v688 = vadd.f32 0.0, %v687
          %689 = vmatmul.f32.gmra.mxu0 %v619
          %v690 = vpop.f32.mrf.mxu0
          %v691 = vadd.f32 0.0, %v690
          %692 = vmatmul.f32.gmra.mxu0 %v620
          %v693 = vpop.f32.mrf.mxu0
          %v694 = vadd.f32 0.0, %v693
          %695 = vmatmul.f32.gmra.mxu0 %v621
          %v696 = vpop.f32.mrf.mxu0
          %v697 = vadd.f32 0.0, %v696
          %698 = vmatmul.f32.gmra.mxu0 %v622
          %v699 = vpop.f32.mrf.mxu0
          %v700 = vadd.f32 0.0, %v699
          %701 = vmatmul.f32.gmra.mxu0 %v623
          %v702 = vpop.f32.mrf.mxu0
          %v703 = vadd.f32 0.0, %v702
          %704 = vdwg.mxu0
          %v705 = vld [vmem:[%s7] sm:$0x1]
          %v707 = vperm.slane %v705, 0
          %v709 = vadd.f32 %v658, %v707
          %v710 = vadd.f32 %v661, %v707
          %v711 = vadd.f32 %v664, %v707
          %v712 = vadd.f32 %v667, %v707
          %v713 = vadd.f32 %v670, %v707
          %v714 = vadd.f32 %v673, %v707
          %v715 = vadd.f32 %v676, %v707
          %v716 = vadd.f32 %v679, %v707
          %v717 = vadd.f32 %v682, %v707
          %v718 = vadd.f32 %v685, %v707
          %v719 = vadd.f32 %v688, %v707
          %v720 = vadd.f32 %v691, %v707
          %v721 = vadd.f32 %v694, %v707
          %v722 = vadd.f32 %v697, %v707
          %v723 = vadd.f32 %v700, %v707
          %v724 = vadd.f32 %v703, %v707
          %725 = vst [vmem:[#allocation3] sm:$0xff] %v709
          %726 = vst [vmem:[#allocation3 + $0x8] sm:$0xff] %v710
          %727 = vst [vmem:[#allocation3 + $0x10] sm:$0xff] %v711
          %728 = vst [vmem:[#allocation3 + $0x18] sm:$0xff] %v712
          %729 = vst [vmem:[#allocation3 + $0x20] sm:$0xff] %v713
          %730 = vst [vmem:[#allocation3 + $0x28] sm:$0xff] %v714
          %731 = vst [vmem:[#allocation3 + $0x30] sm:$0xff] %v715
          %732 = vst [vmem:[#allocation3 + $0x38] sm:$0xff] %v716
          %733 = vst [vmem:[#allocation3 + $0x40] sm:$0xff] %v717
          %734 = vst [vmem:[#allocation3 + $0x48] sm:$0xff] %v718
          %735 = vst [vmem:[#allocation3 + $0x50] sm:$0xff] %v719
          %736 = vst [vmem:[#allocation3 + $0x58] sm:$0xff] %v720
          %737 = vst [vmem:[#allocation3 + $0x60] sm:$0xff] %v721
          %738 = vst [vmem:[#allocation3 + $0x68] sm:$0xff] %v722
          %739 = vst [vmem:[#allocation3 + $0x70] sm:$0xff] %v723
          %740 = vst [vmem:[#allocation3 + $0x78] sm:$0xff] %v724
        $region116: #{tpu_custom_call.1} parent=75 // pred_fallthru
          _
        %s741 = smul.u32 %s42, 8
        %s742 = sld [smem:[#allocation6 + %s741]]
        %s743 = scalar_lea.vmem [#allocation13], %s742
        %v744 = vld [vmem:[%s743] sm:$0x1]
        %745 = vst [vmem:[#allocation4] sm:$0x1] %v744
        %s746 = sadd.s32 %s741, 1
        %s747 = sld [smem:[#allocation6 + %s746]]
        %s748 = scalar_lea.vmem [#allocation13], %s747
        %v749 = vld [vmem:[%s748] sm:$0x1]
        %750 = vst [vmem:[#allocation4 + $0x1] sm:$0x1] %v749
        %s751 = sadd.s32 %s741, 2
        %s752 = sld [smem:[#allocation6 + %s751]]
        %s753 = scalar_lea.vmem [#allocation13], %s752
        %v754 = vld [vmem:[%s753] sm:$0x1]
        %755 = vst [vmem:[#allocation4 + $0x2] sm:$0x1] %v754
        %s756 = sadd.s32 %s741, 3
        %s757 = sld [smem:[#allocation6 + %s756]]
        %s758 = scalar_lea.vmem [#allocation13], %s757
        %v759 = vld [vmem:[%s758] sm:$0x1]
        %760 = vst [vmem:[#allocation4 + $0x3] sm:$0x1] %v759
        %s761 = sadd.s32 %s741, 4
        %s762 = sld [smem:[#allocation6 + %s761]]
        %s763 = scalar_lea.vmem [#allocation13], %s762
        %v764 = vld [vmem:[%s763] sm:$0x1]
        %765 = vst [vmem:[#allocation4 + $0x4] sm:$0x1] %v764
        %s766 = sadd.s32 %s741, 5
        %s767 = sld [smem:[#allocation6 + %s766]]
        %s768 = scalar_lea.vmem [#allocation13], %s767
        %v769 = vld [vmem:[%s768] sm:$0x1]
        %770 = vst [vmem:[#allocation4 + $0x5] sm:$0x1] %v769
        %s771 = sadd.s32 %s741, 6
        %s772 = sld [smem:[#allocation6 + %s771]]
        %s773 = scalar_lea.vmem [#allocation13], %s772
        %v774 = vld [vmem:[%s773] sm:$0x1]
        %775 = vst [vmem:[#allocation4 + $0x6] sm:$0x1] %v774
        %s776 = sadd.s32 %s741, 7
        %s777 = sld [smem:[#allocation6 + %s776]]
        %s778 = scalar_lea.vmem [#allocation13], %s777
        %v779 = vld [vmem:[%s778] sm:$0x1]
        %780 = vst [vmem:[#allocation4 + $0x7] sm:$0x1] %v779
        %v781 = vld [vmem:[#allocation4] sm:$0xff]
        %v782 = vld [vmem:[#allocation2] sm:$0xff]
        %v783 = vld [vmem:[#allocation15] sm:$0xff]
        %v784 = vld [vmem:[#allocation15 + $0x8] sm:$0xff]
        %v785 = vld [vmem:[#allocation15 + $0x10] sm:$0xff]
        %v786 = vld [vmem:[#allocation15 + $0x18] sm:$0xff]
        %v787 = vld [vmem:[#allocation15 + $0x20] sm:$0xff]
        %v788 = vld [vmem:[#allocation15 + $0x28] sm:$0xff]
        %v789 = vld [vmem:[#allocation15 + $0x30] sm:$0xff]
        %v790 = vld [vmem:[#allocation15 + $0x38] sm:$0xff]
        %v791 = vld [vmem:[#allocation15 + $0x40] sm:$0xff]
        %v792 = vld [vmem:[#allocation15 + $0x48] sm:$0xff]
        %v793 = vld [vmem:[#allocation15 + $0x50] sm:$0xff]
        %v794 = vld [vmem:[#allocation15 + $0x58] sm:$0xff]
        %v795 = vld [vmem:[#allocation15 + $0x60] sm:$0xff]
        %v796 = vld [vmem:[#allocation15 + $0x68] sm:$0xff]
        %v797 = vld [vmem:[#allocation15 + $0x70] sm:$0xff]
        %v798 = vld [vmem:[#allocation15 + $0x78] sm:$0xff]
        %799 = vmatpush.msra.mxu0 %v798
        %800 = vmatpush.msra.mxu0 %v797
        %801 = vmatpush.msra.mxu0 %v796
        %802 = vmatpush.msra.mxu0 %v795
        %803 = vmatpush.msra.mxu0 %v794
        %804 = vmatpush.msra.mxu0 %v793
        %805 = vmatpush.msra.mxu0 %v792
        %806 = vmatpush.msra.mxu0 %v791
        %807 = vmatpush.msra.mxu0 %v790
        %808 = vmatpush.msra.mxu0 %v789
        %809 = vmatpush.msra.mxu0 %v788
        %810 = vmatpush.msra.mxu0 %v787
        %811 = vmatpush.msra.mxu0 %v786
        %812 = vmatpush.msra.mxu0 %v785
        %813 = vmatpush.msra.mxu0 %v784
        %814 = vmatpush.msra.mxu0 %v783
        %815 = vmatmul.f32.gmra.mxu0 %v782
        %v816 = vpop.f32.mrf.mxu0
        %v817 = vadd.f32 0.0, %v816
        %818 = vdwg.mxu0
        %v819 = vld [vmem:[#allocation3] sm:$0xff]
        %v820 = vld [vmem:[#allocation3 + $0x8] sm:$0xff]
        %v821 = vld [vmem:[#allocation3 + $0x10] sm:$0xff]
        %v822 = vld [vmem:[#allocation3 + $0x18] sm:$0xff]
        %v823 = vld [vmem:[#allocation3 + $0x20] sm:$0xff]
        %v824 = vld [vmem:[#allocation3 + $0x28] sm:$0xff]
        %v825 = vld [vmem:[#allocation3 + $0x30] sm:$0xff]
        %v826 = vld [vmem:[#allocation3 + $0x38] sm:$0xff]
        %v827 = vld [vmem:[#allocation3 + $0x40] sm:$0xff]
        %v828 = vld [vmem:[#allocation3 + $0x48] sm:$0xff]
        %v829 = vld [vmem:[#allocation3 + $0x50] sm:$0xff]
        %v830 = vld [vmem:[#allocation3 + $0x58] sm:$0xff]
        %v831 = vld [vmem:[#allocation3 + $0x60] sm:$0xff]
        %v832 = vld [vmem:[#allocation3 + $0x68] sm:$0xff]
        %v833 = vld [vmem:[#allocation3 + $0x70] sm:$0xff]
        %v834 = vld [vmem:[#allocation3 + $0x78] sm:$0xff]
        %v836 = vrot.slane %v817, 1
        %v837 = vrot.slane %v817, 2
        %v838 = vrot.slane %v817, 3
        %v839 = vrot.slane %v817, 4
        %v840 = vrot.slane %v817, 5
        %v841 = vrot.slane %v817, 6
        %v842 = vrot.slane %v817, 7
        %v843 = vperm.slane %v817, 0
        %v844 = vperm.slane %v836, 0
        %v845 = vperm.slane %v837, 0
        %v846 = vperm.slane %v838, 0
        %v847 = vperm.slane %v839, 0
        %v848 = vperm.slane %v840, 0
        %v849 = vperm.slane %v841, 0
        %v850 = vperm.slane %v842, 0
        %v859 = vadd.f32 %v819, %v843
        %v860 = vadd.f32 %v820, %v843
        %v861 = vadd.f32 %v821, %v844
        %v862 = vadd.f32 %v822, %v844
        %v863 = vadd.f32 %v823, %v845
        %v864 = vadd.f32 %v824, %v845
        %v865 = vadd.f32 %v825, %v846
        %v866 = vadd.f32 %v826, %v846
        %v867 = vadd.f32 %v827, %v847
        %v868 = vadd.f32 %v828, %v847
        %v869 = vadd.f32 %v829, %v848
        %v870 = vadd.f32 %v830, %v848
        %v871 = vadd.f32 %v831, %v849
        %v872 = vadd.f32 %v832, %v849
        %v873 = vadd.f32 %v833, %v850
        %v874 = vadd.f32 %v834, %v850
        %v875 = vtanh.pop %v859
        %v876 = vtanh.pop %v860
        %v877 = vtanh.pop %v861
        %v878 = vtanh.pop %v862
        %v879 = vtanh.pop %v863
        %v880 = vtanh.pop %v864
        %v881 = vtanh.pop %v865
        %v882 = vtanh.pop %v866
        %v883 = vtanh.pop %v867
        %v884 = vtanh.pop %v868
        %v885 = vtanh.pop %v869
        %v886 = vtanh.pop %v870
        %v887 = vtanh.pop %v871
        %v888 = vtanh.pop %v872
        %v889 = vtanh.pop %v873
        %v890 = vtanh.pop %v874
        %v891 = vld [vmem:[%s8] sm:$0x1]
        %v893 = vperm.slane %v891, 0
        %v895 = vmul.f32 %v875, %v893
        %v896 = vmul.f32 %v876, %v893
        %v897 = vmul.f32 %v877, %v893
        %v898 = vmul.f32 %v878, %v893
        %v899 = vmul.f32 %v879, %v893
        %v900 = vmul.f32 %v880, %v893
        %v901 = vmul.f32 %v881, %v893
        %v902 = vmul.f32 %v882, %v893
        %v903 = vmul.f32 %v883, %v893
        %v904 = vmul.f32 %v884, %v893
        %v905 = vmul.f32 %v885, %v893
        %v906 = vmul.f32 %v886, %v893
        %v907 = vmul.f32 %v887, %v893
        %v908 = vmul.f32 %v888, %v893
        %v909 = vmul.f32 %v889, %v893
        %v910 = vmul.f32 %v890, %v893
        %911 = vadd.xlane.f32.xlu0 %v895
        %v912 = vpop.xlane.xlu0 %911
        %913 = vadd.xlane.f32.xlu0 %v896
        %v914 = vpop.xlane.xlu0 %913
        %915 = vadd.xlane.f32.xlu0 %v897
        %v916 = vpop.xlane.xlu0 %915
        %917 = vadd.xlane.f32.xlu0 %v898
        %v918 = vpop.xlane.xlu0 %917
        %919 = vadd.xlane.f32.xlu0 %v899
        %v920 = vpop.xlane.xlu0 %919
        %921 = vadd.xlane.f32.xlu0 %v900
        %v922 = vpop.xlane.xlu0 %921
        %923 = vadd.xlane.f32.xlu0 %v901
        %v924 = vpop.xlane.xlu0 %923
        %925 = vadd.xlane.f32.xlu0 %v902
        %v926 = vpop.xlane.xlu0 %925
        %927 = vadd.xlane.f32.xlu0 %v903
        %v928 = vpop.xlane.xlu0 %927
        %929 = vadd.xlane.f32.xlu0 %v904
        %v930 = vpop.xlane.xlu0 %929
        %931 = vadd.xlane.f32.xlu0 %v905
        %v932 = vpop.xlane.xlu0 %931
        %933 = vadd.xlane.f32.xlu0 %v906
        %v934 = vpop.xlane.xlu0 %933
        %935 = vadd.xlane.f32.xlu0 %v907
        %v936 = vpop.xlane.xlu0 %935
        %937 = vadd.xlane.f32.xlu0 %v908
        %v938 = vpop.xlane.xlu0 %937
        %939 = vadd.xlane.f32.xlu0 %v909
        %v940 = vpop.xlane.xlu0 %939
        %941 = vadd.xlane.f32.xlu0 %v910
        %v942 = vpop.xlane.xlu0 %941
        %v959 = vlaneseq
        %v960 = vand.u32 %v959, 127
        %v961 = vperm.slane %v912, %v960
        %v962 = vadd.s32 %v960, 4294967288
        %v963 = vperm.slane %v914, %v962
        %vm964 = vcmask 130112
        %v965 = vsel %vm964, %v963, %v961
        %v966 = vperm.slane %v916, %v960
        %v967 = vperm.slane %v918, %v962
        %v968 = vsel %vm964, %v967, %v966
        %v969 = vperm.slane %v920, %v960
        %v970 = vperm.slane %v922, %v962
        %v971 = vsel %vm964, %v970, %v969
        %v972 = vperm.slane %v924, %v960
        %v973 = vperm.slane %v926, %v962
        %v974 = vsel %vm964, %v973, %v972
        %v975 = vperm.slane %v928, %v960
        %v976 = vperm.slane %v930, %v962
        %v977 = vsel %vm964, %v976, %v975
        %v978 = vperm.slane %v932, %v960
        %v979 = vperm.slane %v934, %v962
        %v980 = vsel %vm964, %v979, %v978
        %v981 = vperm.slane %v936, %v960
        %v982 = vperm.slane %v938, %v962
        %v983 = vsel %vm964, %v982, %v981
        %v984 = vperm.slane %v940, %v960
        %v985 = vperm.slane %v942, %v962
        %v986 = vsel %vm964, %v985, %v984
        %vm987 = vcmask 1041409
        %v988 = vsel %vm987, %v968, %v965
        %vm989 = vcmask 1042434
        %v990 = vsel %vm989, %v971, %v988
        %vm991 = vcmask 1043459
        %v992 = vsel %vm991, %v974, %v990
        %vm993 = vcmask 1044484
        %v994 = vsel %vm993, %v977, %v992
        %vm995 = vcmask 1045509
        %v996 = vsel %vm995, %v980, %v994
        %vm997 = vcmask 1046534
        %v998 = vsel %vm997, %v983, %v996
        %vm999 = vcmask 1047559
        %v1000 = vsel %vm999, %v986, %v998
        %vm1002 = vcmask 130048
        %v1003 = vsel %vm1002, %v1000, -inf
        %1004 = vmax.xlane.f32.xlu0 %v1003
        %v1005 = vpop.xlane.xlu0 %1004
        %v1007 = vperm.slane %v1005, 0
        %v1008 = vperm.slane %v1005, 1
        %v1009 = vperm.slane %v1005, 2
        %v1010 = vperm.slane %v1005, 3
        %v1011 = vperm.slane %v1005, 4
        %v1012 = vperm.slane %v1005, 5
        %v1013 = vperm.slane %v1005, 6
        %v1014 = vperm.slane %v1005, 7
        %v1023 = vsub.f32 %v912, %v1007
        %v1024 = vsub.f32 %v914, %v1007
        %v1025 = vsub.f32 %v916, %v1008
        %v1026 = vsub.f32 %v918, %v1008
        %v1027 = vsub.f32 %v920, %v1009
        %v1028 = vsub.f32 %v922, %v1009
        %v1029 = vsub.f32 %v924, %v1010
        %v1030 = vsub.f32 %v926, %v1010
        %v1031 = vsub.f32 %v928, %v1011
        %v1032 = vsub.f32 %v930, %v1011
        %v1033 = vsub.f32 %v932, %v1012
        %v1034 = vsub.f32 %v934, %v1012
        %v1035 = vsub.f32 %v936, %v1013
        %v1036 = vsub.f32 %v938, %v1013
        %v1037 = vsub.f32 %v940, %v1014
        %v1038 = vsub.f32 %v942, %v1014
        %v1039 = vmul.f32 %v1023, 1.442695
        %v1040 = vpow.pop %v1039
        %v1041 = vmul.f32 %v1024, 1.442695
        %v1042 = vpow.pop %v1041
        %v1043 = vmul.f32 %v1025, 1.442695
        %v1044 = vpow.pop %v1043
        %v1045 = vmul.f32 %v1026, 1.442695
        %v1046 = vpow.pop %v1045
        %v1047 = vmul.f32 %v1027, 1.442695
        %v1048 = vpow.pop %v1047
        %v1049 = vmul.f32 %v1028, 1.442695
        %v1050 = vpow.pop %v1049
        %v1051 = vmul.f32 %v1029, 1.442695
        %v1052 = vpow.pop %v1051
        %v1053 = vmul.f32 %v1030, 1.442695
        %v1054 = vpow.pop %v1053
        %v1055 = vmul.f32 %v1031, 1.442695
        %v1056 = vpow.pop %v1055
        %v1057 = vmul.f32 %v1032, 1.442695
        %v1058 = vpow.pop %v1057
        %v1059 = vmul.f32 %v1033, 1.442695
        %v1060 = vpow.pop %v1059
        %v1061 = vmul.f32 %v1034, 1.442695
        %v1062 = vpow.pop %v1061
        %v1063 = vmul.f32 %v1035, 1.442695
        %v1064 = vpow.pop %v1063
        %v1065 = vmul.f32 %v1036, 1.442695
        %v1066 = vpow.pop %v1065
        %v1067 = vmul.f32 %v1037, 1.442695
        %v1068 = vpow.pop %v1067
        %v1069 = vmul.f32 %v1038, 1.442695
        %v1070 = vpow.pop %v1069
        %1087 = vset.pattern.permute.xlu0 0
        %1088 = vperm.xlu0 %1087, %v1040
        %v1089 = vpop.permute.xlu0 %1088
        %1090 = vset.pattern.permute.xlu0 0
        %1091 = vperm.xlu0 %1090, %v1042
        %v1092 = vpop.permute.xlu0 %1091
        %1093 = vset.pattern.permute.xlu0 0
        %1094 = vperm.xlu0 %1093, %v1044
        %v1095 = vpop.permute.xlu0 %1094
        %1096 = vset.pattern.permute.xlu0 0
        %1097 = vperm.xlu0 %1096, %v1046
        %v1098 = vpop.permute.xlu0 %1097
        %1099 = vset.pattern.permute.xlu0 0
        %1100 = vperm.xlu0 %1099, %v1048
        %v1101 = vpop.permute.xlu0 %1100
        %1102 = vset.pattern.permute.xlu0 0
        %1103 = vperm.xlu0 %1102, %v1050
        %v1104 = vpop.permute.xlu0 %1103
        %1105 = vset.pattern.permute.xlu0 0
        %1106 = vperm.xlu0 %1105, %v1052
        %v1107 = vpop.permute.xlu0 %1106
        %1108 = vset.pattern.permute.xlu0 0
        %1109 = vperm.xlu0 %1108, %v1054
        %v1110 = vpop.permute.xlu0 %1109
        %1111 = vset.pattern.permute.xlu0 0
        %1112 = vperm.xlu0 %1111, %v1056
        %v1113 = vpop.permute.xlu0 %1112
        %1114 = vset.pattern.permute.xlu0 0
        %1115 = vperm.xlu0 %1114, %v1058
        %v1116 = vpop.permute.xlu0 %1115
        %1117 = vset.pattern.permute.xlu0 0
        %1118 = vperm.xlu0 %1117, %v1060
        %v1119 = vpop.permute.xlu0 %1118
        %1120 = vset.pattern.permute.xlu0 0
        %1121 = vperm.xlu0 %1120, %v1062
        %v1122 = vpop.permute.xlu0 %1121
        %1123 = vset.pattern.permute.xlu0 0
        %1124 = vperm.xlu0 %1123, %v1064
        %v1125 = vpop.permute.xlu0 %1124
        %1126 = vset.pattern.permute.xlu0 0
        %1127 = vperm.xlu0 %1126, %v1066
        %v1128 = vpop.permute.xlu0 %1127
        %1129 = vset.pattern.permute.xlu0 0
        %1130 = vperm.xlu0 %1129, %v1068
        %v1131 = vpop.permute.xlu0 %1130
        %1132 = vset.pattern.permute.xlu0 0
        %1133 = vperm.xlu0 %1132, %v1070
        %v1134 = vpop.permute.xlu0 %1133
        %v1135 = vperm.slane %v1089, %v960
        %v1136 = vperm.slane %v1092, %v962
        %v1137 = vsel %vm964, %v1136, %v1135
        %v1138 = vperm.slane %v1095, %v960
        %v1139 = vperm.slane %v1098, %v962
        %v1140 = vsel %vm964, %v1139, %v1138
        %v1141 = vperm.slane %v1101, %v960
        %v1142 = vperm.slane %v1104, %v962
        %v1143 = vsel %vm964, %v1142, %v1141
        %v1144 = vperm.slane %v1107, %v960
        %v1145 = vperm.slane %v1110, %v962
        %v1146 = vsel %vm964, %v1145, %v1144
        %v1147 = vperm.slane %v1113, %v960
        %v1148 = vperm.slane %v1116, %v962
        %v1149 = vsel %vm964, %v1148, %v1147
        %v1150 = vperm.slane %v1119, %v960
        %v1151 = vperm.slane %v1122, %v962
        %v1152 = vsel %vm964, %v1151, %v1150
        %v1153 = vperm.slane %v1125, %v960
        %v1154 = vperm.slane %v1128, %v962
        %v1155 = vsel %vm964, %v1154, %v1153
        %v1156 = vperm.slane %v1131, %v960
        %v1157 = vperm.slane %v1134, %v962
        %v1158 = vsel %vm964, %v1157, %v1156
        %v1159 = vsel %vm987, %v1140, %v1137
        %v1160 = vsel %vm989, %v1143, %v1159
        %v1161 = vsel %vm991, %v1146, %v1160
        %v1162 = vsel %vm993, %v1149, %v1161
        %v1163 = vsel %vm995, %v1152, %v1162
        %v1164 = vsel %vm997, %v1155, %v1163
        %v1165 = vsel %vm999, %v1158, %v1164
        %v1167 = vsel %vm1002, %v1165, 0.0
        %1168 = vadd.xlane.f32.xlu0 %v1167
        %v1169 = vpop.xlane.xlu0 %1168
        %v1170 = vrcp.pop %v1169
        %v1172 = vperm.slane %v1170, 0
        %v1173 = vperm.slane %v1170, 1
        %v1174 = vperm.slane %v1170, 2
        %v1175 = vperm.slane %v1170, 3
        %v1176 = vperm.slane %v1170, 4
        %v1177 = vperm.slane %v1170, 5
        %v1178 = vperm.slane %v1170, 6
        %v1179 = vperm.slane %v1170, 7
        %v1188 = vmul.f32 %v1040, %v1172
        %v1189 = vmul.f32 %v1042, %v1172
        %v1190 = vmul.f32 %v1044, %v1173
        %v1191 = vmul.f32 %v1046, %v1173
        %v1192 = vmul.f32 %v1048, %v1174
        %v1193 = vmul.f32 %v1050, %v1174
        %v1194 = vmul.f32 %v1052, %v1175
        %v1195 = vmul.f32 %v1054, %v1175
        %v1196 = vmul.f32 %v1056, %v1176
        %v1197 = vmul.f32 %v1058, %v1176
        %v1198 = vmul.f32 %v1060, %v1177
        %v1199 = vmul.f32 %v1062, %v1177
        %v1200 = vmul.f32 %v1064, %v1178
        %v1201 = vmul.f32 %v1066, %v1178
        %v1202 = vmul.f32 %v1068, %v1179
        %v1203 = vmul.f32 %v1070, %v1179
        %v1204 = vld [vmem:[#allocation10] sm:$0xff]
        %v1205 = vld [vmem:[#allocation10 + $0x8] sm:$0xff]
        %v1206 = vld [vmem:[#allocation10 + $0x10] sm:$0xff]
        %v1207 = vld [vmem:[#allocation10 + $0x18] sm:$0xff]
        %v1208 = vld [vmem:[#allocation10 + $0x20] sm:$0xff]
        %v1209 = vld [vmem:[#allocation10 + $0x28] sm:$0xff]
        %v1210 = vld [vmem:[#allocation10 + $0x30] sm:$0xff]
        %v1211 = vld [vmem:[#allocation10 + $0x38] sm:$0xff]
        %v1212 = vld [vmem:[#allocation10 + $0x40] sm:$0xff]
        %v1213 = vld [vmem:[#allocation10 + $0x48] sm:$0xff]
        %v1214 = vld [vmem:[#allocation10 + $0x50] sm:$0xff]
        %v1215 = vld [vmem:[#allocation10 + $0x58] sm:$0xff]
        %v1216 = vld [vmem:[#allocation10 + $0x60] sm:$0xff]
        %v1217 = vld [vmem:[#allocation10 + $0x68] sm:$0xff]
        %v1218 = vld [vmem:[#allocation10 + $0x70] sm:$0xff]
        %v1219 = vld [vmem:[#allocation10 + $0x78] sm:$0xff]
        %1221 = vset.pattern.permute.xlu0 0
        %1222 = vperm.xlu0 %1221, %v1188
        %v1223 = vpop.permute.xlu0 %1222
        %1226 = vset.pattern.permute.xlu0 0
        %1227 = vperm.xlu0 %1226, %v1189
        %v1228 = vpop.permute.xlu0 %1227
        %1231 = vset.pattern.permute.xlu0 0
        %1232 = vperm.xlu0 %1231, %v1190
        %v1233 = vpop.permute.xlu0 %1232
        %1236 = vset.pattern.permute.xlu0 0
        %1237 = vperm.xlu0 %1236, %v1191
        %v1238 = vpop.permute.xlu0 %1237
        %1241 = vset.pattern.permute.xlu0 0
        %1242 = vperm.xlu0 %1241, %v1192
        %v1243 = vpop.permute.xlu0 %1242
        %1246 = vset.pattern.permute.xlu0 0
        %1247 = vperm.xlu0 %1246, %v1193
        %v1248 = vpop.permute.xlu0 %1247
        %1251 = vset.pattern.permute.xlu0 0
        %1252 = vperm.xlu0 %1251, %v1194
        %v1253 = vpop.permute.xlu0 %1252
        %1256 = vset.pattern.permute.xlu0 0
        %1257 = vperm.xlu0 %1256, %v1195
        %v1258 = vpop.permute.xlu0 %1257
        %1261 = vset.pattern.permute.xlu0 0
        %1262 = vperm.xlu0 %1261, %v1196
        %v1263 = vpop.permute.xlu0 %1262
        %1266 = vset.pattern.permute.xlu0 0
        %1267 = vperm.xlu0 %1266, %v1197
        %v1268 = vpop.permute.xlu0 %1267
        %1271 = vset.pattern.permute.xlu0 0
        %1272 = vperm.xlu0 %1271, %v1198
        %v1273 = vpop.permute.xlu0 %1272
        %1276 = vset.pattern.permute.xlu0 0
        %1277 = vperm.xlu0 %1276, %v1199
        %v1278 = vpop.permute.xlu0 %1277
        %1281 = vset.pattern.permute.xlu0 0
        %1282 = vperm.xlu0 %1281, %v1200
        %v1283 = vpop.permute.xlu0 %1282
        %1286 = vset.pattern.permute.xlu0 0
        %1287 = vperm.xlu0 %1286, %v1201
        %v1288 = vpop.permute.xlu0 %1287
        %1291 = vset.pattern.permute.xlu0 0
        %1292 = vperm.xlu0 %1291, %v1202
        %v1293 = vpop.permute.xlu0 %1292
        %1296 = vset.pattern.permute.xlu0 0
        %1297 = vperm.xlu0 %1296, %v1203
        %v1298 = vpop.permute.xlu0 %1297
        %v1300 = vmul.f32 %v1223, %v1204
        %v1301 = vmul.f32 %v1228, %v1205
        %v1302 = vmul.f32 %v1233, %v1206
        %v1303 = vmul.f32 %v1238, %v1207
        %v1304 = vmul.f32 %v1243, %v1208
        %v1305 = vmul.f32 %v1248, %v1209
        %v1306 = vmul.f32 %v1253, %v1210
        %v1307 = vmul.f32 %v1258, %v1211
        %v1308 = vmul.f32 %v1263, %v1212
        %v1309 = vmul.f32 %v1268, %v1213
        %v1310 = vmul.f32 %v1273, %v1214
        %v1311 = vmul.f32 %v1278, %v1215
        %v1312 = vmul.f32 %v1283, %v1216
        %v1313 = vmul.f32 %v1288, %v1217
        %v1314 = vmul.f32 %v1293, %v1218
        %v1315 = vmul.f32 %v1298, %v1219
        %v1316 = vadd.f32 %v1300, %v1301
        %v1317 = vrot.slane %v1316, 4
        %v1318 = vadd.f32 %v1316, %v1317
        %v1319 = vrot.slane %v1318, 2
        %v1320 = vadd.f32 %v1318, %v1319
        %v1321 = vrot.slane %v1320, 1
        %v1322 = vadd.f32 %v1320, %v1321
        %v1323 = vadd.f32 %v1302, %v1303
        %v1324 = vrot.slane %v1323, 4
        %v1325 = vadd.f32 %v1323, %v1324
        %v1326 = vrot.slane %v1325, 2
        %v1327 = vadd.f32 %v1325, %v1326
        %v1328 = vrot.slane %v1327, 1
        %v1329 = vadd.f32 %v1327, %v1328
        %v1330 = vadd.f32 %v1304, %v1305
        %v1331 = vrot.slane %v1330, 4
        %v1332 = vadd.f32 %v1330, %v1331
        %v1333 = vrot.slane %v1332, 2
        %v1334 = vadd.f32 %v1332, %v1333
        %v1335 = vrot.slane %v1334, 1
        %v1336 = vadd.f32 %v1334, %v1335
        %v1337 = vadd.f32 %v1306, %v1307
        %v1338 = vrot.slane %v1337, 4
        %v1339 = vadd.f32 %v1337, %v1338
        %v1340 = vrot.slane %v1339, 2
        %v1341 = vadd.f32 %v1339, %v1340
        %v1342 = vrot.slane %v1341, 1
        %v1343 = vadd.f32 %v1341, %v1342
        %v1344 = vadd.f32 %v1308, %v1309
        %v1345 = vrot.slane %v1344, 4
        %v1346 = vadd.f32 %v1344, %v1345
        %v1347 = vrot.slane %v1346, 2
        %v1348 = vadd.f32 %v1346, %v1347
        %v1349 = vrot.slane %v1348, 1
        %v1350 = vadd.f32 %v1348, %v1349
        %v1351 = vadd.f32 %v1310, %v1311
        %v1352 = vrot.slane %v1351, 4
        %v1353 = vadd.f32 %v1351, %v1352
        %v1354 = vrot.slane %v1353, 2
        %v1355 = vadd.f32 %v1353, %v1354
        %v1356 = vrot.slane %v1355, 1
        %v1357 = vadd.f32 %v1355, %v1356
        %v1358 = vadd.f32 %v1312, %v1313
        %v1359 = vrot.slane %v1358, 4
        %v1360 = vadd.f32 %v1358, %v1359
        %v1361 = vrot.slane %v1360, 2
        %v1362 = vadd.f32 %v1360, %v1361
        %v1363 = vrot.slane %v1362, 1
        %v1364 = vadd.f32 %v1362, %v1363
        %v1365 = vadd.f32 %v1314, %v1315
        %v1366 = vrot.slane %v1365, 4
        %v1367 = vadd.f32 %v1365, %v1366
        %v1368 = vrot.slane %v1367, 2
        %v1369 = vadd.f32 %v1367, %v1368
        %v1370 = vrot.slane %v1369, 1
        %v1371 = vadd.f32 %v1369, %v1370
        %v1372 = vld [vmem:[#allocation18] sm:$0xff]
        %v1373 = vld [vmem:[#allocation18 + $0x8] sm:$0xff]
        %v1374 = vld [vmem:[#allocation18 + $0x10] sm:$0xff]
        %v1375 = vld [vmem:[#allocation18 + $0x18] sm:$0xff]
        %v1376 = vld [vmem:[#allocation18 + $0x20] sm:$0xff]
        %v1377 = vld [vmem:[#allocation18 + $0x28] sm:$0xff]
        %v1378 = vld [vmem:[#allocation18 + $0x30] sm:$0xff]
        %v1379 = vld [vmem:[#allocation18 + $0x38] sm:$0xff]
        %v1380 = vld [vmem:[#allocation18 + $0x40] sm:$0xff]
        %v1381 = vld [vmem:[#allocation18 + $0x48] sm:$0xff]
        %v1382 = vld [vmem:[#allocation18 + $0x50] sm:$0xff]
        %v1383 = vld [vmem:[#allocation18 + $0x58] sm:$0xff]
        %v1384 = vld [vmem:[#allocation18 + $0x60] sm:$0xff]
        %v1385 = vld [vmem:[#allocation18 + $0x68] sm:$0xff]
        %v1386 = vld [vmem:[#allocation18 + $0x70] sm:$0xff]
        %v1387 = vld [vmem:[#allocation18 + $0x78] sm:$0xff]
        %v1388 = vld [vmem:[#allocation18 + $0x80] sm:$0xff]
        %v1389 = vld [vmem:[#allocation18 + $0x88] sm:$0xff]
        %v1390 = vld [vmem:[#allocation18 + $0x90] sm:$0xff]
        %v1391 = vld [vmem:[#allocation18 + $0x98] sm:$0xff]
        %v1392 = vld [vmem:[#allocation18 + $0xa0] sm:$0xff]
        %v1393 = vld [vmem:[#allocation18 + $0xa8] sm:$0xff]
        %v1394 = vld [vmem:[#allocation18 + $0xb0] sm:$0xff]
        %v1395 = vld [vmem:[#allocation18 + $0xb8] sm:$0xff]
        %v1396 = vld [vmem:[#allocation18 + $0xc0] sm:$0xff]
        %v1397 = vld [vmem:[#allocation18 + $0xc8] sm:$0xff]
        %v1398 = vld [vmem:[#allocation18 + $0xd0] sm:$0xff]
        %v1399 = vld [vmem:[#allocation18 + $0xd8] sm:$0xff]
        %v1400 = vld [vmem:[#allocation18 + $0xe0] sm:$0xff]
        %v1401 = vld [vmem:[#allocation18 + $0xe8] sm:$0xff]
        %v1402 = vld [vmem:[#allocation18 + $0xf0] sm:$0xff]
        %v1403 = vld [vmem:[#allocation18 + $0xf8] sm:$0xff]
        %v1404 = vld [vmem:[#allocation18 + $0x100] sm:$0xff]
        %v1405 = vld [vmem:[#allocation18 + $0x108] sm:$0xff]
        %v1406 = vld [vmem:[#allocation18 + $0x110] sm:$0xff]
        %v1407 = vld [vmem:[#allocation18 + $0x118] sm:$0xff]
        %v1408 = vld [vmem:[#allocation18 + $0x120] sm:$0xff]
        %v1409 = vld [vmem:[#allocation18 + $0x128] sm:$0xff]
        %v1410 = vld [vmem:[#allocation18 + $0x130] sm:$0xff]
        %v1411 = vld [vmem:[#allocation18 + $0x138] sm:$0xff]
        %v1412 = vld [vmem:[#allocation18 + $0x140] sm:$0xff]
        %v1413 = vld [vmem:[#allocation18 + $0x148] sm:$0xff]
        %v1414 = vld [vmem:[#allocation18 + $0x150] sm:$0xff]
        %v1415 = vld [vmem:[#allocation18 + $0x158] sm:$0xff]
        %v1416 = vld [vmem:[#allocation18 + $0x160] sm:$0xff]
        %v1417 = vld [vmem:[#allocation18 + $0x168] sm:$0xff]
        %v1418 = vld [vmem:[#allocation18 + $0x170] sm:$0xff]
        %v1419 = vld [vmem:[#allocation18 + $0x178] sm:$0xff]
        %v1420 = vld [vmem:[#allocation19] sm:$0xff]
        %v1421 = vld [vmem:[#allocation19 + $0x8] sm:$0xff]
        %v1422 = vld [vmem:[#allocation19 + $0x10] sm:$0xff]
        %v1423 = vld [vmem:[#allocation19 + $0x18] sm:$0xff]
        %v1424 = vld [vmem:[#allocation19 + $0x20] sm:$0xff]
        %v1425 = vld [vmem:[#allocation19 + $0x28] sm:$0xff]
        %v1426 = vld [vmem:[#allocation19 + $0x30] sm:$0xff]
        %v1427 = vld [vmem:[#allocation19 + $0x38] sm:$0xff]
        %v1428 = vld [vmem:[#allocation19 + $0x40] sm:$0xff]
        %v1429 = vld [vmem:[#allocation19 + $0x48] sm:$0xff]
        %v1430 = vld [vmem:[#allocation19 + $0x50] sm:$0xff]
        %v1431 = vld [vmem:[#allocation19 + $0x58] sm:$0xff]
        %v1432 = vld [vmem:[#allocation19 + $0x60] sm:$0xff]
        %v1433 = vld [vmem:[#allocation19 + $0x68] sm:$0xff]
        %v1434 = vld [vmem:[#allocation19 + $0x70] sm:$0xff]
        %v1435 = vld [vmem:[#allocation19 + $0x78] sm:$0xff]
        %v1436 = vld [vmem:[#allocation19 + $0x80] sm:$0xff]
        %v1437 = vld [vmem:[#allocation19 + $0x88] sm:$0xff]
        %v1438 = vld [vmem:[#allocation19 + $0x90] sm:$0xff]
        %v1439 = vld [vmem:[#allocation19 + $0x98] sm:$0xff]
        %v1440 = vld [vmem:[#allocation19 + $0xa0] sm:$0xff]
        %v1441 = vld [vmem:[#allocation19 + $0xa8] sm:$0xff]
        %v1442 = vld [vmem:[#allocation19 + $0xb0] sm:$0xff]
        %v1443 = vld [vmem:[#allocation19 + $0xb8] sm:$0xff]
        %v1444 = vld [vmem:[#allocation19 + $0xc0] sm:$0xff]
        %v1445 = vld [vmem:[#allocation19 + $0xc8] sm:$0xff]
        %v1446 = vld [vmem:[#allocation19 + $0xd0] sm:$0xff]
        %v1447 = vld [vmem:[#allocation19 + $0xd8] sm:$0xff]
        %v1448 = vld [vmem:[#allocation19 + $0xe0] sm:$0xff]
        %v1449 = vld [vmem:[#allocation19 + $0xe8] sm:$0xff]
        %v1450 = vld [vmem:[#allocation19 + $0xf0] sm:$0xff]
        %v1451 = vld [vmem:[#allocation19 + $0xf8] sm:$0xff]
        %v1452 = vld [vmem:[#allocation19 + $0x100] sm:$0xff]
        %v1453 = vld [vmem:[#allocation19 + $0x108] sm:$0xff]
        %v1454 = vld [vmem:[#allocation19 + $0x110] sm:$0xff]
        %v1455 = vld [vmem:[#allocation19 + $0x118] sm:$0xff]
        %v1456 = vld [vmem:[#allocation19 + $0x120] sm:$0xff]
        %v1457 = vld [vmem:[#allocation19 + $0x128] sm:$0xff]
        %v1458 = vld [vmem:[#allocation19 + $0x130] sm:$0xff]
        %v1459 = vld [vmem:[#allocation19 + $0x138] sm:$0xff]
        %v1460 = vld [vmem:[#allocation19 + $0x140] sm:$0xff]
        %v1461 = vld [vmem:[#allocation19 + $0x148] sm:$0xff]
        %v1462 = vld [vmem:[#allocation19 + $0x150] sm:$0xff]
        %v1463 = vld [vmem:[#allocation19 + $0x158] sm:$0xff]
        %v1464 = vld [vmem:[#allocation19 + $0x160] sm:$0xff]
        %v1465 = vld [vmem:[#allocation19 + $0x168] sm:$0xff]
        %v1466 = vld [vmem:[#allocation19 + $0x170] sm:$0xff]
        %v1467 = vld [vmem:[#allocation19 + $0x178] sm:$0xff]
        %v1476 = vsel %vm987, %v1329, %v1322
        %v1477 = vsel %vm989, %v1336, %v1476
        %v1478 = vsel %vm991, %v1343, %v1477
        %v1479 = vsel %vm993, %v1350, %v1478
        %v1480 = vsel %vm995, %v1357, %v1479
        %v1481 = vsel %vm997, %v1364, %v1480
        %v1482 = vsel %vm999, %v1371, %v1481
        %1484 = vmatpush.msra.mxu0 %v1465
        %1485 = vmatpush.msra.mxu0 %v1462
        %1486 = vmatpush.msra.mxu0 %v1459
        %1487 = vmatpush.msra.mxu0 %v1456
        %1488 = vmatpush.msra.mxu0 %v1453
        %1489 = vmatpush.msra.mxu0 %v1450
        %1490 = vmatpush.msra.mxu0 %v1447
        %1491 = vmatpush.msra.mxu0 %v1444
        %1492 = vmatpush.msra.mxu0 %v1441
        %1493 = vmatpush.msra.mxu0 %v1438
        %1494 = vmatpush.msra.mxu0 %v1435
        %1495 = vmatpush.msra.mxu0 %v1432
        %1496 = vmatpush.msra.mxu0 %v1429
        %1497 = vmatpush.msra.mxu0 %v1426
        %1498 = vmatpush.msra.mxu0 %v1423
        %1499 = vmatpush.msra.mxu0 %v1420
        %1500 = vmatmul.f32.gmra.mxu0 %v1482
        %v1501 = vpop.f32.mrf.mxu0
        %v1502 = vadd.f32 0.0, %v1501
        %1503 = vdwg.mxu0
        %1504 = vmatpush.msra.mxu0 %v1466
        %1505 = vmatpush.msra.mxu0 %v1463
        %1506 = vmatpush.msra.mxu0 %v1460
        %1507 = vmatpush.msra.mxu0 %v1457
        %1508 = vmatpush.msra.mxu0 %v1454
        %1509 = vmatpush.msra.mxu0 %v1451
        %1510 = vmatpush.msra.mxu0 %v1448
        %1511 = vmatpush.msra.mxu0 %v1445
        %1512 = vmatpush.msra.mxu0 %v1442
        %1513 = vmatpush.msra.mxu0 %v1439
        %1514 = vmatpush.msra.mxu0 %v1436
        %1515 = vmatpush.msra.mxu0 %v1433
        %1516 = vmatpush.msra.mxu0 %v1430
        %1517 = vmatpush.msra.mxu0 %v1427
        %1518 = vmatpush.msra.mxu0 %v1424
        %1519 = vmatpush.msra.mxu0 %v1421
        %1520 = vmatmul.f32.gmra.mxu0 %v1482
        %v1521 = vpop.f32.mrf.mxu0
        %v1522 = vadd.f32 0.0, %v1521
        %1523 = vdwg.mxu0
        %1524 = vmatpush.msra.mxu0 %v1467
        %1525 = vmatpush.msra.mxu0 %v1464
        %1526 = vmatpush.msra.mxu0 %v1461
        %1527 = vmatpush.msra.mxu0 %v1458
        %1528 = vmatpush.msra.mxu0 %v1455
        %1529 = vmatpush.msra.mxu0 %v1452
        %1530 = vmatpush.msra.mxu0 %v1449
        %1531 = vmatpush.msra.mxu0 %v1446
        %1532 = vmatpush.msra.mxu0 %v1443
        %1533 = vmatpush.msra.mxu0 %v1440
        %1534 = vmatpush.msra.mxu0 %v1437
        %1535 = vmatpush.msra.mxu0 %v1434
        %1536 = vmatpush.msra.mxu0 %v1431
        %1537 = vmatpush.msra.mxu0 %v1428
        %1538 = vmatpush.msra.mxu0 %v1425
        %1539 = vmatpush.msra.mxu0 %v1422
        %1540 = vmatmul.f32.gmra.mxu0 %v1482
        %v1541 = vpop.f32.mrf.mxu0
        %v1542 = vadd.f32 0.0, %v1541
        %1543 = vdwg.mxu0
        %1544 = vmatpush.msra.mxu0 %v1417
        %1545 = vmatpush.msra.mxu0 %v1414
        %1546 = vmatpush.msra.mxu0 %v1411
        %1547 = vmatpush.msra.mxu0 %v1408
        %1548 = vmatpush.msra.mxu0 %v1405
        %1549 = vmatpush.msra.mxu0 %v1402
        %1550 = vmatpush.msra.mxu0 %v1399
        %1551 = vmatpush.msra.mxu0 %v1396
        %1552 = vmatpush.msra.mxu0 %v1393
        %1553 = vmatpush.msra.mxu0 %v1390
        %1554 = vmatpush.msra.mxu0 %v1387
        %1555 = vmatpush.msra.mxu0 %v1384
        %1556 = vmatpush.msra.mxu0 %v1381
        %1557 = vmatpush.msra.mxu0 %v1378
        %1558 = vmatpush.msra.mxu0 %v1375
        %1559 = vmatpush.msra.mxu0 %v1372
        %1560 = vmatmul.f32.gmra.mxu0 %v781
        %v1561 = vpop.f32.mrf.mxu0
        %v1562 = vadd.f32 %v1502, %v1561
        %1563 = vdwg.mxu0
        %1564 = vmatpush.msra.mxu0 %v1418
        %1565 = vmatpush.msra.mxu0 %v1415
        %1566 = vmatpush.msra.mxu0 %v1412
        %1567 = vmatpush.msra.mxu0 %v1409
        %1568 = vmatpush.msra.mxu0 %v1406
        %1569 = vmatpush.msra.mxu0 %v1403
        %1570 = vmatpush.msra.mxu0 %v1400
        %1571 = vmatpush.msra.mxu0 %v1397
        %1572 = vmatpush.msra.mxu0 %v1394
        %1573 = vmatpush.msra.mxu0 %v1391
        %1574 = vmatpush.msra.mxu0 %v1388
        %1575 = vmatpush.msra.mxu0 %v1385
        %1576 = vmatpush.msra.mxu0 %v1382
        %1577 = vmatpush.msra.mxu0 %v1379
        %1578 = vmatpush.msra.mxu0 %v1376
        %1579 = vmatpush.msra.mxu0 %v1373
        %1580 = vmatmul.f32.gmra.mxu0 %v781
        %v1581 = vpop.f32.mrf.mxu0
        %v1582 = vadd.f32 %v1522, %v1581
        %1583 = vdwg.mxu0
        %1584 = vmatpush.msra.mxu0 %v1419
        %1585 = vmatpush.msra.mxu0 %v1416
        %1586 = vmatpush.msra.mxu0 %v1413
        %1587 = vmatpush.msra.mxu0 %v1410
        %1588 = vmatpush.msra.mxu0 %v1407
        %1589 = vmatpush.msra.mxu0 %v1404
        %1590 = vmatpush.msra.mxu0 %v1401
        %1591 = vmatpush.msra.mxu0 %v1398
        %1592 = vmatpush.msra.mxu0 %v1395
        %1593 = vmatpush.msra.mxu0 %v1392
        %1594 = vmatpush.msra.mxu0 %v1389
        %1595 = vmatpush.msra.mxu0 %v1386
        %1596 = vmatpush.msra.mxu0 %v1383
        %1597 = vmatpush.msra.mxu0 %v1380
        %1598 = vmatpush.msra.mxu0 %v1377
        %1599 = vmatpush.msra.mxu0 %v1374
        %1600 = vmatmul.f32.gmra.mxu0 %v781
        %v1601 = vpop.f32.mrf.mxu0
        %v1602 = vadd.f32 %v1542, %v1601
        %1603 = vdwg.mxu0
        %v1604 = vld [vmem:[#allocation21] sm:$0xff]
        %v1605 = vld [vmem:[#allocation21 + $0x8] sm:$0xff]
        %v1606 = vld [vmem:[#allocation21 + $0x10] sm:$0xff]
        %v1607 = vld [vmem:[#allocation21 + $0x18] sm:$0xff]
        %v1608 = vld [vmem:[#allocation21 + $0x20] sm:$0xff]
        %v1609 = vld [vmem:[#allocation21 + $0x28] sm:$0xff]
        %v1610 = vld [vmem:[#allocation21 + $0x30] sm:$0xff]
        %v1611 = vld [vmem:[#allocation21 + $0x38] sm:$0xff]
        %v1612 = vld [vmem:[#allocation21 + $0x40] sm:$0xff]
        %v1613 = vld [vmem:[#allocation21 + $0x48] sm:$0xff]
        %v1614 = vld [vmem:[#allocation21 + $0x50] sm:$0xff]
        %v1615 = vld [vmem:[#allocation21 + $0x58] sm:$0xff]
        %v1616 = vld [vmem:[#allocation21 + $0x60] sm:$0xff]
        %v1617 = vld [vmem:[#allocation21 + $0x68] sm:$0xff]
        %v1618 = vld [vmem:[#allocation21 + $0x70] sm:$0xff]
        %v1619 = vld [vmem:[#allocation21 + $0x78] sm:$0xff]
        %v1620 = vld [vmem:[#allocation21 + $0x80] sm:$0xff]
        %v1621 = vld [vmem:[#allocation21 + $0x88] sm:$0xff]
        %v1622 = vld [vmem:[#allocation21 + $0x90] sm:$0xff]
        %v1623 = vld [vmem:[#allocation21 + $0x98] sm:$0xff]
        %v1624 = vld [vmem:[#allocation21 + $0xa0] sm:$0xff]
        %v1625 = vld [vmem:[#allocation21 + $0xa8] sm:$0xff]
        %v1626 = vld [vmem:[#allocation21 + $0xb0] sm:$0xff]
        %v1627 = vld [vmem:[#allocation21 + $0xb8] sm:$0xff]
        %v1628 = vld [vmem:[#allocation21 + $0xc0] sm:$0xff]
        %v1629 = vld [vmem:[#allocation21 + $0xc8] sm:$0xff]
        %v1630 = vld [vmem:[#allocation21 + $0xd0] sm:$0xff]
        %v1631 = vld [vmem:[#allocation21 + $0xd8] sm:$0xff]
        %v1632 = vld [vmem:[#allocation21 + $0xe0] sm:$0xff]
        %v1633 = vld [vmem:[#allocation21 + $0xe8] sm:$0xff]
        %v1634 = vld [vmem:[#allocation21 + $0xf0] sm:$0xff]
        %v1635 = vld [vmem:[#allocation21 + $0xf8] sm:$0xff]
        %v1636 = vld [vmem:[#allocation21 + $0x100] sm:$0xff]
        %v1637 = vld [vmem:[#allocation21 + $0x108] sm:$0xff]
        %v1638 = vld [vmem:[#allocation21 + $0x110] sm:$0xff]
        %v1639 = vld [vmem:[#allocation21 + $0x118] sm:$0xff]
        %v1640 = vld [vmem:[#allocation21 + $0x120] sm:$0xff]
        %v1641 = vld [vmem:[#allocation21 + $0x128] sm:$0xff]
        %v1642 = vld [vmem:[#allocation21 + $0x130] sm:$0xff]
        %v1643 = vld [vmem:[#allocation21 + $0x138] sm:$0xff]
        %v1644 = vld [vmem:[#allocation21 + $0x140] sm:$0xff]
        %v1645 = vld [vmem:[#allocation21 + $0x148] sm:$0xff]
        %v1646 = vld [vmem:[#allocation21 + $0x150] sm:$0xff]
        %v1647 = vld [vmem:[#allocation21 + $0x158] sm:$0xff]
        %v1648 = vld [vmem:[#allocation21 + $0x160] sm:$0xff]
        %v1649 = vld [vmem:[#allocation21 + $0x168] sm:$0xff]
        %v1650 = vld [vmem:[#allocation21 + $0x170] sm:$0xff]
        %v1651 = vld [vmem:[#allocation21 + $0x178] sm:$0xff]
        %1652 = vmatpush.msra.mxu0 %v1649
        %1653 = vmatpush.msra.mxu0 %v1646
        %1654 = vmatpush.msra.mxu0 %v1643
        %1655 = vmatpush.msra.mxu0 %v1640
        %1656 = vmatpush.msra.mxu0 %v1637
        %1657 = vmatpush.msra.mxu0 %v1634
        %1658 = vmatpush.msra.mxu0 %v1631
        %1659 = vmatpush.msra.mxu0 %v1628
        %1660 = vmatpush.msra.mxu0 %v1625
        %1661 = vmatpush.msra.mxu0 %v1622
        %1662 = vmatpush.msra.mxu0 %v1619
        %1663 = vmatpush.msra.mxu0 %v1616
        %1664 = vmatpush.msra.mxu0 %v1613
        %1665 = vmatpush.msra.mxu0 %v1610
        %1666 = vmatpush.msra.mxu0 %v1607
        %1667 = vmatpush.msra.mxu0 %v1604
        %1668 = vmatmul.f32.gmra.mxu0 %v782
        %v1669 = vpop.f32.mrf.mxu0
        %v1670 = vadd.f32 0.0, %v1669
        %1671 = vdwg.mxu0
        %1672 = vmatpush.msra.mxu0 %v1650
        %1673 = vmatpush.msra.mxu0 %v1647
        %1674 = vmatpush.msra.mxu0 %v1644
        %1675 = vmatpush.msra.mxu0 %v1641
        %1676 = vmatpush.msra.mxu0 %v1638
        %1677 = vmatpush.msra.mxu0 %v1635
        %1678 = vmatpush.msra.mxu0 %v1632
        %1679 = vmatpush.msra.mxu0 %v1629
        %1680 = vmatpush.msra.mxu0 %v1626
        %1681 = vmatpush.msra.mxu0 %v1623
        %1682 = vmatpush.msra.mxu0 %v1620
        %1683 = vmatpush.msra.mxu0 %v1617
        %1684 = vmatpush.msra.mxu0 %v1614
        %1685 = vmatpush.msra.mxu0 %v1611
        %1686 = vmatpush.msra.mxu0 %v1608
        %1687 = vmatpush.msra.mxu0 %v1605
        %1688 = vmatmul.f32.gmra.mxu0 %v782
        %v1689 = vpop.f32.mrf.mxu0
        %v1690 = vadd.f32 0.0, %v1689
        %1691 = vdwg.mxu0
        %1692 = vmatpush.msra.mxu0 %v1651
        %1693 = vmatpush.msra.mxu0 %v1648
        %1694 = vmatpush.msra.mxu0 %v1645
        %1695 = vmatpush.msra.mxu0 %v1642
        %1696 = vmatpush.msra.mxu0 %v1639
        %1697 = vmatpush.msra.mxu0 %v1636
        %1698 = vmatpush.msra.mxu0 %v1633
        %1699 = vmatpush.msra.mxu0 %v1630
        %1700 = vmatpush.msra.mxu0 %v1627
        %1701 = vmatpush.msra.mxu0 %v1624
        %1702 = vmatpush.msra.mxu0 %v1621
        %1703 = vmatpush.msra.mxu0 %v1618
        %1704 = vmatpush.msra.mxu0 %v1615
        %1705 = vmatpush.msra.mxu0 %v1612
        %1706 = vmatpush.msra.mxu0 %v1609
        %1707 = vmatpush.msra.mxu0 %v1606
        %1708 = vmatmul.f32.gmra.mxu0 %v782
        %v1709 = vpop.f32.mrf.mxu0
        %v1710 = vadd.f32 0.0, %v1709
        %1711 = vdwg.mxu0
        %v1712 = vadd.f32 %v1562, %v1670
        %v1713 = vadd.f32 %v1582, %v1690
        %v1714 = vld [vmem:[%s12] sm:$0x3]
        %v1716 = vperm.slane %v1714, 0
        %v1717 = vperm.slane %v1714, 1
        %v1720 = vadd.f32 %v1712, %v1716
        %v1721 = vadd.f32 %v1713, %v1717
        %v1722 = vxor.u32 %v1720, 2147483648
        %v1723 = vxor.u32 %v1721, 2147483648
        %v1724 = vmul.f32 %v1722, 1.442695
        %v1725 = vpow.pop %v1724
        %v1726 = vmul.f32 %v1723, 1.442695
        %v1727 = vpow.pop %v1726
        %v1728 = vadd.f32 %v1725, 1.0
        %v1729 = vadd.f32 %v1727, 1.0
        %v1730 = vrcp.pop %v1728
        %v1731 = vmul.f32 %v1728, %v1730
        %v1732 = vsub.f32 1.0, %v1731
        %v1733 = vmul.f32 %v1730, %v1732
        %v1734 = vadd.f32 %v1730, %v1733
        %vm1735 = vweird.f32 %v1728
        %vm1736 = vweird.f32 %v1730
        %vm1737 = vmor %vm1735, %vm1736
        %v1738 = vsel %vm1737, %v1730, %v1734
        %v1739 = vand.u32 2147483647, %v1728
        %vm1740 = vcmp.eq.f32.partialorder %v1739, 8.507059e+37
        %v1741 = vand.u32 %v1728, 2147483648
        %v1742 = vor.u32 1.1754944e-38, %v1741
        %v1743 = vsel %vm1740, %v1742, %v1738
        %v1744 = vmul.f32 1.0, %v1743
        %v1745 = vrcp.pop %v1729
        %v1746 = vmul.f32 %v1729, %v1745
        %v1747 = vsub.f32 1.0, %v1746
        %v1748 = vmul.f32 %v1745, %v1747
        %v1749 = vadd.f32 %v1745, %v1748
        %vm1750 = vweird.f32 %v1729
        %vm1751 = vweird.f32 %v1745
        %vm1752 = vmor %vm1750, %vm1751
        %v1753 = vsel %vm1752, %v1745, %v1749
        %v1754 = vand.u32 2147483647, %v1729
        %vm1755 = vcmp.eq.f32.partialorder %v1754, 8.507059e+37
        %v1756 = vand.u32 %v1729, 2147483648
        %v1757 = vor.u32 1.1754944e-38, %v1756
        %v1758 = vsel %vm1755, %v1757, %v1753
        %v1759 = vmul.f32 1.0, %v1758
        %v1760 = vld [vmem:[%s13] sm:$0x1]
        %v1762 = vperm.slane %v1760, 0
        %v1764 = vadd.f32 %v1602, %v1762
        %v1765 = vld [vmem:[%s14] sm:$0x1]
        %v1767 = vperm.slane %v1765, 0
        %v1769 = vadd.f32 %v1710, %v1767
        %v1770 = vmul.f32 %v1744, %v1769
        %v1771 = vadd.f32 %v1764, %v1770
        %v1772 = vtanh.pop %v1771
        %v1773 = vsub.f32 1.0, %v1759
        %v1774 = vmul.f32 %v1773, %v1772
        %v1775 = vmul.f32 %v1759, %v782
        %v1776 = vadd.f32 %v1774, %v1775
        %1777 = vst [vmem:[#allocation2] sm:$0xff] %v1776
        %1778 = vst [vmem:[%s601] sm:$0xff] %v1776
        %s1779 = sand.u32 %s344, 1
        %s1780 = scalar_lea.sflag [#allocation9], %s1779
        %s1781 = sand.u32 %s344, 1
        %s1782 = smul.addr %s1781, 8
        %s1783 = scalar_lea.vmem [#allocation22], %s1782
        // Predicated region
        $region117: #{tpu_custom_call.1} parent=75 // pred_check
          %p1784 = pneg %p354
        $region118: #{tpu_custom_call.1} parent=75 // pred_check_branch
          %1786 = sbr.rel (%p1784) target = $region120
        $region119: #{tpu_custom_call.1} parent=75 // pred_region
          %1788 = vsyncadd %s1780, 0
          %s1789 = smul.addr %s42, 8
          %s1790 = scalar_lea.hbm %s15, %s1789
          %s1792 = sshll.u32 %s1783, 4
          %s1793 = int_to_ptr.vmem [resolvable:$true] %s1792
          %s1794 = sshll.u32 %s1790, 4
          %s1795 = int_to_ptr.hbm [resolvable:$true] %s1794
          %1797 = dma.vmem_to_hbm [thread:$0]  %s1793, 128, %s1795, %s1780
        $region120: #{tpu_custom_call.1} parent=75 // pred_fallthru
          _
      $region76: #{tpu_custom_call.1} parent=5 // pred_fallthru
        _
      %p1798 = scmp.le.s32.totalorder 2, %s37
      // Predicated region
      $region121: #{tpu_custom_call.1} parent=5 // pred_check
        %p1799 = pneg %p1798
      $region122: #{tpu_custom_call.1} parent=5 // pred_check_branch
        %1801 = sbr.rel (%p1799) target = $region124
      $region123: #{tpu_custom_call.1} parent=5 // pred_region
        %s1802 = ssub.s32 %s37, 2
        // Predicated region
        $region125: #{tpu_custom_call.1} parent=123 // pred_check
          %p1803 = pneg %p360
        $region126: #{tpu_custom_call.1} parent=123 // pred_check_branch
          %1805 = sbr.rel (%p1803) target = $region128
        $region127: #{tpu_custom_call.1} parent=123 // pred_region
          %s1806 = sand.u32 %s345, 1
          %s1807 = scalar_lea.sflag [#allocation9], %s1806
          %s1808 = sand.u32 %s345, 1
          %s1809 = smul.addr %s1808, 8
          %s1810 = scalar_lea.vmem [#allocation22], %s1809
          %1812 = dma.done %s1807, 128
        $region128: #{tpu_custom_call.1} parent=123 // pred_fallthru
          _
      $region124: #{tpu_custom_call.1} parent=5 // pred_fallthru
        _
    $region6: #{tpu_custom_call.1} parent=1 // loop_footer
      %s41 = sadd.s32 1, %s37
    $region7: #{tpu_custom_call.1} parent=1 // loop_footer_branch
      %36 = sbr.rel target = $region3
    $region8: #{tpu_custom_call.1} parent=1 // loop_exit
      _
    %1813 = vsyncpa [#allocation8], 1
    %s1814 = scalar_lea.sflag [#allocation8], 1
    %1815 = vsyncpa %s1814, 1
    %1816 = vsyncpa [#allocation11], 1
    %1817 = vsyncpa [#allocation14], 1
    %1818 = vsyncpa [#allocation17], 1
    %1819 = vsyncpa [#allocation20], 1
    %1820 = vsyncpa [#allocation9], 1
    %s1821 = scalar_lea.sflag [#allocation9], 1
    %1822 = vsyncpa %s1821, 1

</llo_original>
